<compile_context>
chip_gen: v6e
topology: v6e:2x2x1
jax: 0.10.0
libtpu: 0.0.40
codegen_flags: <defaults>
</compile_context>

<pallas_src>
import jax
import jax.numpy as jnp
from jax.experimental import pallas as pl
from jax.experimental.pallas import tpu as pltpu


# ---------------------------------------------------------------------------
# Fused Pallas kernel (whole DenseDDCB forward for one image per grid step)
# ---------------------------------------------------------------------------

def make_ddcb_kernel(nb_layers, in_planes, growth, out_planes, H, W, pad_l):
    M = H * W

    def kernel(*refs):
        x_ref = refs[0]
        col_idx_ref = refs[1]
        layer_refs = refs[2:2 + 3 * nb_layers]
        s1_ref, b1_ref, w1_ref = refs[2 + 3 * nb_layers:5 + 3 * nb_layers]
        o_ref = refs[5 + 3 * nb_layers]
        slab_ref, pad_ref, im2col_ref = refs[6 + 3 * nb_layers:9 + 3 * nb_layers]

        # Zero the row-flattened padded buffer once per image: the interior is
        # always rewritten at the fixed lane-aligned offset `pad_l`, the zero
        # border lanes (which absorb out-of-range row taps) are never dirtied.
        # (Not guarded on program_id: scratch is per-core and grid steps may be
        # split across TensorCores on v7x.)
        pad_ref[...] = jnp.zeros_like(pad_ref)

        # Input (Cin, H*W) straight into the top sublanes of the resident slab.
        slab_ref[0:in_planes, :] = x_ref[0, :, :]

        col_idx = col_idx_ref[...]  # (1, M) int32: lane -> image column index

        c = in_planes
        for i in range(nb_layers):
            s_ref = layer_refs[3 * i]
            b_ref = layer_refs[3 * i + 1]
            w_ref = layer_refs[3 * i + 2]
            d = i + 1  # dilation == padding == visual

            # Folded eval-mode BN + ReLU on the dense prefix (VMEM resident).
            h = jnp.maximum(slab_ref[0:c, :] * s_ref[...] + b_ref[...], 0.0)
            pad_ref[0:c, pad_l:pad_l + M] = h

            # Build the (9c, M) im2col block: 9 shifted, column-masked copies.
            # Row over/under-runs land in the zero borders of pad_ref; column
            # wrap-around across rows is killed by the column-index mask.
            for di in range(3):
                for dj in range(3):
                    off = (di - 1) * d * W + (dj - 1) * d
                    win = pad_ref[0:c, pad_l + off:pad_l + off + M]
                    tap = di * 3 + dj
                    if dj == 1:
                        im2col_ref[tap * c:(tap + 1) * c, :] = win
                    else:
                        sc = col_idx + (dj - 1) * d
                        mask = (sc >= 0) & (sc < W)
                        im2col_ref[tap * c:(tap + 1) * c, :] = jnp.where(mask, win, 0.0)

            # 3x3 dilated conv == ONE MXU dot: (growth, 9c) x (9c, M) -> (growth, M).
            acc = jnp.dot(w_ref[...], im2col_ref[0:9 * c, :],
                          preferred_element_type=jnp.float32)

            # Dense concat for free: next sublane slice of the resident slab.
            slab_ref[c:c + growth, :] = acc
            c += growth

        # Transition: BN -> ReLU -> 1x1 conv (channel matmul) -> ReLU, lane-dense.
        ht = jnp.maximum(slab_ref[...] * s1_ref[...] + b1_ref[...], 0.0)
        y = jnp.dot(w1_ref[...], ht, preferred_element_type=jnp.float32)
        o_ref[0, :, :] = jnp.maximum(y, 0.0)

    return kernel


# ---------------------------------------------------------------------------
# Wrapper
# ---------------------------------------------------------------------------

def dense_ddcb_forward(x_nchw, params):
    N, Cin, H, W = x_nchw.shape
    blocks = params["blocks"]
    nb_layers = len(blocks)
    growth = blocks[0]["w9t"].shape[0]
    c_total = Cin + nb_layers * growth
    out_planes = params["w1t"].shape[0]
    M = H * W
    dmax = nb_layers                          # dilation of the last dense layer
    max_off = dmax * W + dmax                 # largest flat-index tap shift
    pad_l = ((max_off + 127) // 128) * 128    # lane-aligned interior offset
    P = M + 2 * pad_l
    c_max = Cin + (nb_layers - 1) * growth    # widest dense-layer *input* width

    # Free XLA layout plumbing: channels on sublanes, flattened HW on lanes.
    x_flat = x_nchw.reshape(N, Cin, M)
    col_idx = (jnp.arange(M, dtype=jnp.int32) % W).reshape(1, M)

    inputs = [x_flat, col_idx]
    in_specs = [
        pl.BlockSpec((1, Cin, M), lambda n: (n, 0, 0)),
        pl.BlockSpec((1, M), lambda n: (0, 0)),
    ]
    for blk in blocks:
        c = blk["scale"].shape[0]
        inputs += [blk["scale"], blk["shift"], blk["w9t"]]
        in_specs += [
            pl.BlockSpec((c, 1), lambda n: (0, 0)),
            pl.BlockSpec((c, 1), lambda n: (0, 0)),
            pl.BlockSpec((growth, 9 * c), lambda n: (0, 0)),
        ]
    inputs += [params["scale1"], params["shift1"], params["w1t"]]
    in_specs += [
        pl.BlockSpec((c_total, 1), lambda n: (0, 0)),
        pl.BlockSpec((c_total, 1), lambda n: (0, 0)),
        pl.BlockSpec((out_planes, c_total), lambda n: (0, 0)),
    ]

    y_flat = pl.pallas_call(
        make_ddcb_kernel(nb_layers, Cin, growth, out_planes, H, W, pad_l),
        out_shape=jax.ShapeDtypeStruct((N, out_planes, M), jnp.float32),
        grid=(N,),
        in_specs=in_specs,
        out_specs=pl.BlockSpec((1, out_planes, M), lambda n: (n, 0, 0)),
        scratch_shapes=[
            pltpu.VMEM((c_total, M), jnp.float32),     # resident dense feature slab
            pltpu.VMEM((c_max, P), jnp.float32),       # row-flattened zero-padded feats
            pltpu.VMEM((9 * c_max, M), jnp.float32),   # per-layer im2col buffer
        ],
        compiler_params=pltpu.CompilerParams(
            dimension_semantics=("parallel",),
            vmem_limit_bytes=32 * 1024 * 1024),
    )(*inputs)
    # Free reshape back to NCHW (PyTorch layout).
    return y_flat.reshape(N, out_planes, H, W)


# ---------------------------------------------------------------------------
# Parameter setup (folded eval-mode BN) + pure-JAX reference
# ---------------------------------------------------------------------------

def fold_bn(gamma, beta, mean, var, eps=1e-5):
    scale = gamma / jnp.sqrt(var + eps)
    shift = beta - mean * scale
    return scale.reshape(-1, 1), shift.reshape(-1, 1)   # (c, 1): channels on sublanes


def init_params(key, nb_layers, in_planes, growth_rate, out_planes):
    params = {"blocks": []}
    c = in_planes
    for i in range(nb_layers):
        key, k_w, k_g, k_b, k_m, k_v = jax.random.split(key, 6)
        gamma = 1.0 + 0.1 * jax.random.normal(k_g, (c,), jnp.float32)
        beta = 0.1 * jax.random.normal(k_b, (c,), jnp.float32)
        mean = 0.1 * jax.random.normal(k_m, (c,), jnp.float32)
        var = jnp.abs(1.0 + 0.1 * jax.random.normal(k_v, (c,), jnp.float32))
        scale, shift = fold_bn(gamma, beta, mean, var)
        w_hwio = 0.1 * jax.random.normal(k_w, (3, 3, c, growth_rate), jnp.float32)
        # (growth, 9*c), tap-major along K, for the single im2col dot per layer.
        w9t = jnp.transpose(w_hwio.reshape(9, c, growth_rate),
                            (2, 0, 1)).reshape(growth_rate, 9 * c)
        params["blocks"].append({
            "scale": scale, "shift": shift,
            "w9t": w9t,
            "w_hwio": w_hwio,          # for the lax.conv reference
            "dilation": i + 1,
        })
        c += growth_rate
    key, k_w, k_g, k_b, k_m, k_v = jax.random.split(key, 6)
    gamma = 1.0 + 0.1 * jax.random.normal(k_g, (c,), jnp.float32)
    beta = 0.1 * jax.random.normal(k_b, (c,), jnp.float32)
    mean = 0.1 * jax.random.normal(k_m, (c,), jnp.float32)
    var = jnp.abs(1.0 + 0.1 * jax.random.normal(k_v, (c,), jnp.float32))
    params["scale1"], params["shift1"] = fold_bn(gamma, beta, mean, var)
    params["w1t"] = 0.1 * jax.random.normal(k_w, (out_planes, c), jnp.float32)
    return params


def dense_ddcb_reference(x_nchw, params):
    feat = jnp.transpose(x_nchw, (0, 2, 3, 1))
    dn = ("NHWC", "HWIO", "NHWC")
    for blk in params["blocks"]:
        h = jnp.maximum(feat * blk["scale"].reshape(1, 1, 1, -1)
                        + blk["shift"].reshape(1, 1, 1, -1), 0.0)
        d = blk["dilation"]
        out = jax.lax.conv_general_dilated(
            h, blk["w_hwio"], window_strides=(1, 1), padding=((d, d), (d, d)),
            rhs_dilation=(d, d), dimension_numbers=dn)
        feat = jnp.concatenate([feat, out], axis=-1)
    h = jnp.maximum(feat * params["scale1"].reshape(1, 1, 1, -1)
                    + params["shift1"].reshape(1, 1, 1, -1), 0.0)
    y = jnp.maximum(jnp.einsum("nhwc,oc->nhwo", h, params["w1t"]), 0.0)
    return jnp.transpose(y, (0, 3, 1, 2))


if __name__ == "__main__":
    # DenseDDCB(nb_layers=3, in_planes=8, out_planes=16, growth_rate=4, block=DDCB block)
    nb_layers, in_planes, growth_rate, out_planes = 3, 8, 4, 16
    N, H, W = 2, 16, 16

    key = jax.random.PRNGKey(0)
    key, kx = jax.random.split(key)
    x = jax.random.normal(kx, (N, in_planes, H, W), jnp.float32)  # NCHW like PyTorch
    params = init_params(key, nb_layers, in_planes, growth_rate, out_planes)

    fwd = jax.jit(dense_ddcb_forward)
    y = jax.block_until_ready(fwd(x, params))
    assert y.shape == (N, out_planes, H, W), y.shape

    y_ref = jax.block_until_ready(dense_ddcb_reference(x, params))
    err = float(jnp.max(jnp.abs(y - y_ref)))
    assert jnp.allclose(y, y_ref, atol=1e-3, rtol=1e-3), err

    print("KERNEL_OK")
</pallas_src>

<mosaic_0001>
module attributes {stable_mosaic.version = 11 : i64} {
  func.func @kernel(%arg0: i32, %arg1: memref<1x8x256xf32, #tpu.memory_space<vmem>>, %arg2: memref<1x256xi32, #tpu.memory_space<vmem>>, %arg3: memref<8x1xf32, #tpu.memory_space<vmem>>, %arg4: memref<8x1xf32, #tpu.memory_space<vmem>>, %arg5: memref<4x72xf32, #tpu.memory_space<vmem>>, %arg6: memref<12x1xf32, #tpu.memory_space<vmem>>, %arg7: memref<12x1xf32, #tpu.memory_space<vmem>>, %arg8: memref<4x108xf32, #tpu.memory_space<vmem>>, %arg9: memref<16x1xf32, #tpu.memory_space<vmem>>, %arg10: memref<16x1xf32, #tpu.memory_space<vmem>>, %arg11: memref<4x144xf32, #tpu.memory_space<vmem>>, %arg12: memref<20x1xf32, #tpu.memory_space<vmem>>, %arg13: memref<20x1xf32, #tpu.memory_space<vmem>>, %arg14: memref<16x20xf32, #tpu.memory_space<vmem>>, %arg15: memref<1x16x256xf32, #tpu.memory_space<vmem>>, %arg16: memref<20x256xf32, #tpu.memory_space<vmem>>, %arg17: memref<16x512xf32, #tpu.memory_space<vmem>>, %arg18: memref<144x256xf32, #tpu.memory_space<vmem>>) attributes {dimension_semantics = [#tpu.dimension_semantics<parallel>], iteration_bounds = array<i64: 2>, scalar_prefetch = 0 : i64, scratch_operands = 3 : i64, tpu.core_type = #tpu.core_type<tc>, window_params = [{transform_indices = @transform_0, window_bounds = array<i64: 1, 8, 256>}, {pipeline_mode = #tpu.pipeline_mode<synchronous>, transform_indices = @transform_1, window_bounds = array<i64: 1, 256>}, {pipeline_mode = #tpu.pipeline_mode<synchronous>, transform_indices = @transform_2, window_bounds = array<i64: 8, 1>}, {pipeline_mode = #tpu.pipeline_mode<synchronous>, transform_indices = @transform_3, window_bounds = array<i64: 8, 1>}, {pipeline_mode = #tpu.pipeline_mode<synchronous>, transform_indices = @transform_4, window_bounds = array<i64: 4, 72>}, {pipeline_mode = #tpu.pipeline_mode<synchronous>, transform_indices = @transform_5, window_bounds = array<i64: 12, 1>}, {pipeline_mode = #tpu.pipeline_mode<synchronous>, transform_indices = @transform_6, window_bounds = array<i64: 12, 1>}, {pipeline_mode = #tpu.pipeline_mode<synchronous>, transform_indices = @transform_7, window_bounds = array<i64: 4, 108>}, {pipeline_mode = #tpu.pipeline_mode<synchronous>, transform_indices = @transform_8, window_bounds = array<i64: 16, 1>}, {pipeline_mode = #tpu.pipeline_mode<synchronous>, transform_indices = @transform_9, window_bounds = array<i64: 16, 1>}, {pipeline_mode = #tpu.pipeline_mode<synchronous>, transform_indices = @transform_10, window_bounds = array<i64: 4, 144>}, {pipeline_mode = #tpu.pipeline_mode<synchronous>, transform_indices = @transform_11, window_bounds = array<i64: 20, 1>}, {pipeline_mode = #tpu.pipeline_mode<synchronous>, transform_indices = @transform_12, window_bounds = array<i64: 20, 1>}, {pipeline_mode = #tpu.pipeline_mode<synchronous>, transform_indices = @transform_13, window_bounds = array<i64: 16, 20>}, {transform_indices = @transform_14, window_bounds = array<i64: 1, 16, 256>}]} {
    %cst = arith.constant 0.000000e+00 : f32
    %0 = vector.broadcast %cst : f32 to vector<16x512xf32>
    %c0 = arith.constant 0 : index
    %c0_0 = arith.constant 0 : index
    %1 = vector.load %arg17[%c0, %c0_0] : memref<16x512xf32, #tpu.memory_space<vmem>>, vector<16x512xf32>
    tpu.vector_store %arg17[%c0, %c0_0], %0 {strides = array<i32>} : memref<16x512xf32, #tpu.memory_space<vmem>>, vector<16x512xf32>,
    %c0_1 = arith.constant 0 : index
    %c0_2 = arith.constant 0 : index
    %c0_3 = arith.constant 0 : index
    %2 = vector.load %arg1[%c0_1, %c0_2, %c0_3] : memref<1x8x256xf32, #tpu.memory_space<vmem>>, vector<1x8x256xf32>
    %3 = vector.shape_cast %2 : vector<1x8x256xf32> to vector<8x256xf32>
    %c0_4 = arith.constant 0 : index
    %c0_5 = arith.constant 0 : index
    %4 = vector.load %arg16[%c0_4, %c0_5] : memref<20x256xf32, #tpu.memory_space<vmem>>, vector<8x256xf32>
    tpu.vector_store %arg16[%c0_4, %c0_5], %3 {strides = array<i32>} : memref<20x256xf32, #tpu.memory_space<vmem>>, vector<8x256xf32>,
    %c0_6 = arith.constant 0 : index
    %c0_7 = arith.constant 0 : index
    %5 = vector.load %arg2[%c0_6, %c0_7] : memref<1x256xi32, #tpu.memory_space<vmem>>, vector<1x256xi32>
    %c0_8 = arith.constant 0 : index
    %c0_9 = arith.constant 0 : index
    %6 = vector.load %arg16[%c0_8, %c0_9] : memref<20x256xf32, #tpu.memory_space<vmem>>, vector<8x256xf32>
    %c0_10 = arith.constant 0 : index
    %c0_11 = arith.constant 0 : index
    %7 = vector.load %arg3[%c0_10, %c0_11] : memref<8x1xf32, #tpu.memory_space<vmem>>, vector<8x1xf32>
    %8 = vector.broadcast %7 : vector<8x1xf32> to vector<8x256xf32>
    %9 = arith.mulf %6, %8 : vector<8x256xf32>
    %c0_12 = arith.constant 0 : index
    %c0_13 = arith.constant 0 : index
    %10 = vector.load %arg4[%c0_12, %c0_13] : memref<8x1xf32, #tpu.memory_space<vmem>>, vector<8x1xf32>
    %11 = vector.broadcast %10 : vector<8x1xf32> to vector<8x256xf32>
    %12 = arith.addf %9, %11 : vector<8x256xf32>
    %cst_14 = arith.constant 0.000000e+00 : f32
    %13 = vector.broadcast %cst_14 : f32 to vector<8x256xf32>
    %14 = arith.maximumf %12, %13 : vector<8x256xf32>
    %c0_15 = arith.constant 0 : index
    %c128 = arith.constant 128 : index
    %15 = vector.load %arg17[%c0_15, %c128] : memref<16x512xf32, #tpu.memory_space<vmem>>, vector<8x256xf32>
    tpu.vector_store %arg17[%c0_15, %c128], %14 {strides = array<i32>} : memref<16x512xf32, #tpu.memory_space<vmem>>, vector<8x256xf32>,
    %c0_16 = arith.constant 0 : index
    %c111 = arith.constant 111 : index
    %16 = vector.load %arg17[%c0_16, %c111] : memref<16x512xf32, #tpu.memory_space<vmem>>, vector<8x256xf32>
    %c-1_i32 = arith.constant -1 : i32
    %17 = vector.broadcast %c-1_i32 : i32 to vector<1x256xi32>
    %18 = arith.addi %5, %17 : vector<1x256xi32>
    %c0_i32 = arith.constant 0 : i32
    %19 = vector.broadcast %c0_i32 : i32 to vector<1x256xi32>
    %20 = arith.cmpi sge, %18, %19 : vector<1x256xi32>
    %c16_i32 = arith.constant 16 : i32
    %21 = vector.broadcast %c16_i32 : i32 to vector<1x256xi32>
    %22 = arith.cmpi slt, %18, %21 : vector<1x256xi32>
    %23 = arith.andi %20, %22 : vector<1x256xi1>
    %cst_17 = arith.constant 0.000000e+00 : f32
    %24 = vector.shape_cast %23 : vector<1x256xi1> to vector<1x256xi1>
    %25 = vector.broadcast %24 : vector<1x256xi1> to vector<8x256xi1>
    %26 = vector.broadcast %cst_17 : f32 to vector<8x256xf32>
    %27 = arith.select %25, %16, %26 : vector<8x256xi1>, vector<8x256xf32>
    %c0_18 = arith.constant 0 : index
    %c0_19 = arith.constant 0 : index
    %28 = vector.load %arg18[%c0_18, %c0_19] : memref<144x256xf32, #tpu.memory_space<vmem>>, vector<8x256xf32>
    tpu.vector_store %arg18[%c0_18, %c0_19], %27 {strides = array<i32>} : memref<144x256xf32, #tpu.memory_space<vmem>>, vector<8x256xf32>,
    %c0_20 = arith.constant 0 : index
    %c112 = arith.constant 112 : index
    %29 = vector.load %arg17[%c0_20, %c112] : memref<16x512xf32, #tpu.memory_space<vmem>>, vector<8x256xf32>
    %c8 = arith.constant 8 : index
    %c0_21 = arith.constant 0 : index
    %30 = vector.load %arg18[%c8, %c0_21] : memref<144x256xf32, #tpu.memory_space<vmem>>, vector<8x256xf32>
    tpu.vector_store %arg18[%c8, %c0_21], %29 {strides = array<i32>} : memref<144x256xf32, #tpu.memory_space<vmem>>, vector<8x256xf32>,
    %c0_22 = arith.constant 0 : index
    %c113 = arith.constant 113 : index
    %31 = vector.load %arg17[%c0_22, %c113] : memref<16x512xf32, #tpu.memory_space<vmem>>, vector<8x256xf32>
    %c1_i32 = arith.constant 1 : i32
    %32 = vector.broadcast %c1_i32 : i32 to vector<1x256xi32>
    %33 = arith.addi %5, %32 : vector<1x256xi32>
    %c0_i32_23 = arith.constant 0 : i32
    %34 = vector.broadcast %c0_i32_23 : i32 to vector<1x256xi32>
    %35 = arith.cmpi sge, %33, %34 : vector<1x256xi32>
    %c16_i32_24 = arith.constant 16 : i32
    %36 = vector.broadcast %c16_i32_24 : i32 to vector<1x256xi32>
    %37 = arith.cmpi slt, %33, %36 : vector<1x256xi32>
    %38 = arith.andi %35, %37 : vector<1x256xi1>
    %cst_25 = arith.constant 0.000000e+00 : f32
    %39 = vector.shape_cast %38 : vector<1x256xi1> to vector<1x256xi1>
    %40 = vector.broadcast %39 : vector<1x256xi1> to vector<8x256xi1>
    %41 = vector.broadcast %cst_25 : f32 to vector<8x256xf32>
    %42 = arith.select %40, %31, %41 : vector<8x256xi1>, vector<8x256xf32>
    %c16 = arith.constant 16 : index
    %c0_26 = arith.constant 0 : index
    %43 = vector.load %arg18[%c16, %c0_26] : memref<144x256xf32, #tpu.memory_space<vmem>>, vector<8x256xf32>
    tpu.vector_store %arg18[%c16, %c0_26], %42 {strides = array<i32>} : memref<144x256xf32, #tpu.memory_space<vmem>>, vector<8x256xf32>,
    %c0_27 = arith.constant 0 : index
    %c127 = arith.constant 127 : index
    %44 = vector.load %arg17[%c0_27, %c127] : memref<16x512xf32, #tpu.memory_space<vmem>>, vector<8x256xf32>
    %c-1_i32_28 = arith.constant -1 : i32
    %45 = vector.broadcast %c-1_i32_28 : i32 to vector<1x256xi32>
    %46 = arith.addi %5, %45 : vector<1x256xi32>
    %c0_i32_29 = arith.constant 0 : i32
    %47 = vector.broadcast %c0_i32_29 : i32 to vector<1x256xi32>
    %48 = arith.cmpi sge, %46, %47 : vector<1x256xi32>
    %c16_i32_30 = arith.constant 16 : i32
    %49 = vector.broadcast %c16_i32_30 : i32 to vector<1x256xi32>
    %50 = arith.cmpi slt, %46, %49 : vector<1x256xi32>
    %51 = arith.andi %48, %50 : vector<1x256xi1>
    %cst_31 = arith.constant 0.000000e+00 : f32
    %52 = vector.shape_cast %51 : vector<1x256xi1> to vector<1x256xi1>
    %53 = vector.broadcast %52 : vector<1x256xi1> to vector<8x256xi1>
    %54 = vector.broadcast %cst_31 : f32 to vector<8x256xf32>
    %55 = arith.select %53, %44, %54 : vector<8x256xi1>, vector<8x256xf32>
    %c24 = arith.constant 24 : index
    %c0_32 = arith.constant 0 : index
    %56 = vector.load %arg18[%c24, %c0_32] : memref<144x256xf32, #tpu.memory_space<vmem>>, vector<8x256xf32>
    tpu.vector_store %arg18[%c24, %c0_32], %55 {strides = array<i32>} : memref<144x256xf32, #tpu.memory_space<vmem>>, vector<8x256xf32>,
    %c0_33 = arith.constant 0 : index
    %c128_34 = arith.constant 128 : index
    %57 = vector.load %arg17[%c0_33, %c128_34] : memref<16x512xf32, #tpu.memory_space<vmem>>, vector<8x256xf32>
    %c32 = arith.constant 32 : index
    %c0_35 = arith.constant 0 : index
    %58 = vector.load %arg18[%c32, %c0_35] : memref<144x256xf32, #tpu.memory_space<vmem>>, vector<8x256xf32>
    tpu.vector_store %arg18[%c32, %c0_35], %57 {strides = array<i32>} : memref<144x256xf32, #tpu.memory_space<vmem>>, vector<8x256xf32>,
    %c0_36 = arith.constant 0 : index
    %c129 = arith.constant 129 : index
    %59 = vector.load %arg17[%c0_36, %c129] : memref<16x512xf32, #tpu.memory_space<vmem>>, vector<8x256xf32>
    %c1_i32_37 = arith.constant 1 : i32
    %60 = vector.broadcast %c1_i32_37 : i32 to vector<1x256xi32>
    %61 = arith.addi %5, %60 : vector<1x256xi32>
    %c0_i32_38 = arith.constant 0 : i32
    %62 = vector.broadcast %c0_i32_38 : i32 to vector<1x256xi32>
    %63 = arith.cmpi sge, %61, %62 : vector<1x256xi32>
    %c16_i32_39 = arith.constant 16 : i32
    %64 = vector.broadcast %c16_i32_39 : i32 to vector<1x256xi32>
    %65 = arith.cmpi slt, %61, %64 : vector<1x256xi32>
    %66 = arith.andi %63, %65 : vector<1x256xi1>
    %cst_40 = arith.constant 0.000000e+00 : f32
    %67 = vector.shape_cast %66 : vector<1x256xi1> to vector<1x256xi1>
    %68 = vector.broadcast %67 : vector<1x256xi1> to vector<8x256xi1>
    %69 = vector.broadcast %cst_40 : f32 to vector<8x256xf32>
    %70 = arith.select %68, %59, %69 : vector<8x256xi1>, vector<8x256xf32>
    %c40 = arith.constant 40 : index
    %c0_41 = arith.constant 0 : index
    %71 = vector.load %arg18[%c40, %c0_41] : memref<144x256xf32, #tpu.memory_space<vmem>>, vector<8x256xf32>
    tpu.vector_store %arg18[%c40, %c0_41], %70 {strides = array<i32>} : memref<144x256xf32, #tpu.memory_space<vmem>>, vector<8x256xf32>,
    %c0_42 = arith.constant 0 : index
    %c143 = arith.constant 143 : index
    %72 = vector.load %arg17[%c0_42, %c143] : memref<16x512xf32, #tpu.memory_space<vmem>>, vector<8x256xf32>
    %c-1_i32_43 = arith.constant -1 : i32
    %73 = vector.broadcast %c-1_i32_43 : i32 to vector<1x256xi32>
    %74 = arith.addi %5, %73 : vector<1x256xi32>
    %c0_i32_44 = arith.constant 0 : i32
    %75 = vector.broadcast %c0_i32_44 : i32 to vector<1x256xi32>
    %76 = arith.cmpi sge, %74, %75 : vector<1x256xi32>
    %c16_i32_45 = arith.constant 16 : i32
    %77 = vector.broadcast %c16_i32_45 : i32 to vector<1x256xi32>
    %78 = arith.cmpi slt, %74, %77 : vector<1x256xi32>
    %79 = arith.andi %76, %78 : vector<1x256xi1>
    %cst_46 = arith.constant 0.000000e+00 : f32
    %80 = vector.shape_cast %79 : vector<1x256xi1> to vector<1x256xi1>
    %81 = vector.broadcast %80 : vector<1x256xi1> to vector<8x256xi1>
    %82 = vector.broadcast %cst_46 : f32 to vector<8x256xf32>
    %83 = arith.select %81, %72, %82 : vector<8x256xi1>, vector<8x256xf32>
    %c48 = arith.constant 48 : index
    %c0_47 = arith.constant 0 : index
    %84 = vector.load %arg18[%c48, %c0_47] : memref<144x256xf32, #tpu.memory_space<vmem>>, vector<8x256xf32>
    tpu.vector_store %arg18[%c48, %c0_47], %83 {strides = array<i32>} : memref<144x256xf32, #tpu.memory_space<vmem>>, vector<8x256xf32>,
    %c0_48 = arith.constant 0 : index
    %c144 = arith.constant 144 : index
    %85 = vector.load %arg17[%c0_48, %c144] : memref<16x512xf32, #tpu.memory_space<vmem>>, vector<8x256xf32>
    %c56 = arith.constant 56 : index
    %c0_49 = arith.constant 0 : index
    %86 = vector.load %arg18[%c56, %c0_49] : memref<144x256xf32, #tpu.memory_space<vmem>>, vector<8x256xf32>
    tpu.vector_store %arg18[%c56, %c0_49], %85 {strides = array<i32>} : memref<144x256xf32, #tpu.memory_space<vmem>>, vector<8x256xf32>,
    %c0_50 = arith.constant 0 : index
    %c145 = arith.constant 145 : index
    %87 = vector.load %arg17[%c0_50, %c145] : memref<16x512xf32, #tpu.memory_space<vmem>>, vector<8x256xf32>
    %c1_i32_51 = arith.constant 1 : i32
    %88 = vector.broadcast %c1_i32_51 : i32 to vector<1x256xi32>
    %89 = arith.addi %5, %88 : vector<1x256xi32>
    %c0_i32_52 = arith.constant 0 : i32
    %90 = vector.broadcast %c0_i32_52 : i32 to vector<1x256xi32>
    %91 = arith.cmpi sge, %89, %90 : vector<1x256xi32>
    %c16_i32_53 = arith.constant 16 : i32
    %92 = vector.broadcast %c16_i32_53 : i32 to vector<1x256xi32>
    %93 = arith.cmpi slt, %89, %92 : vector<1x256xi32>
    %94 = arith.andi %91, %93 : vector<1x256xi1>
    %cst_54 = arith.constant 0.000000e+00 : f32
    %95 = vector.shape_cast %94 : vector<1x256xi1> to vector<1x256xi1>
    %96 = vector.broadcast %95 : vector<1x256xi1> to vector<8x256xi1>
    %97 = vector.broadcast %cst_54 : f32 to vector<8x256xf32>
    %98 = arith.select %96, %87, %97 : vector<8x256xi1>, vector<8x256xf32>
    %c64 = arith.constant 64 : index
    %c0_55 = arith.constant 0 : index
    %99 = vector.load %arg18[%c64, %c0_55] : memref<144x256xf32, #tpu.memory_space<vmem>>, vector<8x256xf32>
    tpu.vector_store %arg18[%c64, %c0_55], %98 {strides = array<i32>} : memref<144x256xf32, #tpu.memory_space<vmem>>, vector<8x256xf32>,
    %c0_56 = arith.constant 0 : index
    %c0_57 = arith.constant 0 : index
    %100 = vector.load %arg5[%c0_56, %c0_57] : memref<4x72xf32, #tpu.memory_space<vmem>>, vector<4x72xf32>
    %c0_58 = arith.constant 0 : index
    %c0_59 = arith.constant 0 : index
    %101 = vector.load %arg18[%c0_58, %c0_59] : memref<144x256xf32, #tpu.memory_space<vmem>>, vector<72x256xf32>
    %cst_60 = arith.constant dense<0.000000e+00> : vector<4x256xf32>
    %102 = tpu.matmul %100, %101, %cst_60 {dimension_numbers = #tpu.dot_dimension_numbers<[1], [0], [0], [1], [0, 0, 1, 1], [], []>} : vector<4x72xf32>, vector<72x256xf32>, vector<4x256xf32> -> vector<4x256xf32>
    %c8_61 = arith.constant 8 : index
    %c0_62 = arith.constant 0 : index
    %103 = vector.load %arg16[%c8_61, %c0_62] : memref<20x256xf32, #tpu.memory_space<vmem>>, vector<4x256xf32>
    tpu.vector_store %arg16[%c8_61, %c0_62], %102 {strides = array<i32>} : memref<20x256xf32, #tpu.memory_space<vmem>>, vector<4x256xf32>,
    %c0_63 = arith.constant 0 : index
    %c0_64 = arith.constant 0 : index
    %104 = vector.load %arg16[%c0_63, %c0_64] : memref<20x256xf32, #tpu.memory_space<vmem>>, vector<12x256xf32>
    %c0_65 = arith.constant 0 : index
    %c0_66 = arith.constant 0 : index
    %105 = vector.load %arg6[%c0_65, %c0_66] : memref<12x1xf32, #tpu.memory_space<vmem>>, vector<12x1xf32>
    %106 = vector.broadcast %105 : vector<12x1xf32> to vector<12x256xf32>
    %107 = arith.mulf %104, %106 : vector<12x256xf32>
    %c0_67 = arith.constant 0 : index
    %c0_68 = arith.constant 0 : index
    %108 = vector.load %arg7[%c0_67, %c0_68] : memref<12x1xf32, #tpu.memory_space<vmem>>, vector<12x1xf32>
    %109 = vector.broadcast %108 : vector<12x1xf32> to vector<12x256xf32>
    %110 = arith.addf %107, %109 : vector<12x256xf32>
    %cst_69 = arith.constant 0.000000e+00 : f32
    %111 = vector.broadcast %cst_69 : f32 to vector<12x256xf32>
    %112 = arith.maximumf %110, %111 : vector<12x256xf32>
    %c0_70 = arith.constant 0 : index
    %c128_71 = arith.constant 128 : index
    %113 = vector.load %arg17[%c0_70, %c128_71] : memref<16x512xf32, #tpu.memory_space<vmem>>, vector<12x256xf32>
    tpu.vector_store %arg17[%c0_70, %c128_71], %112 {strides = array<i32>} : memref<16x512xf32, #tpu.memory_space<vmem>>, vector<12x256xf32>,
    %c0_72 = arith.constant 0 : index
    %c94 = arith.constant 94 : index
    %114 = vector.load %arg17[%c0_72, %c94] : memref<16x512xf32, #tpu.memory_space<vmem>>, vector<12x256xf32>
    %c-2_i32 = arith.constant -2 : i32
    %115 = vector.broadcast %c-2_i32 : i32 to vector<1x256xi32>
    %116 = arith.addi %5, %115 : vector<1x256xi32>
    %c0_i32_73 = arith.constant 0 : i32
    %117 = vector.broadcast %c0_i32_73 : i32 to vector<1x256xi32>
    %118 = arith.cmpi sge, %116, %117 : vector<1x256xi32>
    %c16_i32_74 = arith.constant 16 : i32
    %119 = vector.broadcast %c16_i32_74 : i32 to vector<1x256xi32>
    %120 = arith.cmpi slt, %116, %119 : vector<1x256xi32>
    %121 = arith.andi %118, %120 : vector<1x256xi1>
    %cst_75 = arith.constant 0.000000e+00 : f32
    %122 = vector.shape_cast %121 : vector<1x256xi1> to vector<1x256xi1>
    %123 = vector.broadcast %122 : vector<1x256xi1> to vector<12x256xi1>
    %124 = vector.broadcast %cst_75 : f32 to vector<12x256xf32>
    %125 = arith.select %123, %114, %124 : vector<12x256xi1>, vector<12x256xf32>
    %c0_76 = arith.constant 0 : index
    %c0_77 = arith.constant 0 : index
    %126 = vector.load %arg18[%c0_76, %c0_77] : memref<144x256xf32, #tpu.memory_space<vmem>>, vector<12x256xf32>
    tpu.vector_store %arg18[%c0_76, %c0_77], %125 {strides = array<i32>} : memref<144x256xf32, #tpu.memory_space<vmem>>, vector<12x256xf32>,
    %c0_78 = arith.constant 0 : index
    %c96 = arith.constant 96 : index
    %127 = vector.load %arg17[%c0_78, %c96] : memref<16x512xf32, #tpu.memory_space<vmem>>, vector<12x256xf32>
    %c12 = arith.constant 12 : index
    %c0_79 = arith.constant 0 : index
    %128 = vector.load %arg18[%c12, %c0_79] : memref<144x256xf32, #tpu.memory_space<vmem>>, vector<12x256xf32>
    tpu.vector_store %arg18[%c12, %c0_79], %127 {strides = array<i32>} : memref<144x256xf32, #tpu.memory_space<vmem>>, vector<12x256xf32>,
    %c0_80 = arith.constant 0 : index
    %c98 = arith.constant 98 : index
    %129 = vector.load %arg17[%c0_80, %c98] : memref<16x512xf32, #tpu.memory_space<vmem>>, vector<12x256xf32>
    %c2_i32 = arith.constant 2 : i32
    %130 = vector.broadcast %c2_i32 : i32 to vector<1x256xi32>
    %131 = arith.addi %5, %130 : vector<1x256xi32>
    %c0_i32_81 = arith.constant 0 : i32
    %132 = vector.broadcast %c0_i32_81 : i32 to vector<1x256xi32>
    %133 = arith.cmpi sge, %131, %132 : vector<1x256xi32>
    %c16_i32_82 = arith.constant 16 : i32
    %134 = vector.broadcast %c16_i32_82 : i32 to vector<1x256xi32>
    %135 = arith.cmpi slt, %131, %134 : vector<1x256xi32>
    %136 = arith.andi %133, %135 : vector<1x256xi1>
    %cst_83 = arith.constant 0.000000e+00 : f32
    %137 = vector.shape_cast %136 : vector<1x256xi1> to vector<1x256xi1>
    %138 = vector.broadcast %137 : vector<1x256xi1> to vector<12x256xi1>
    %139 = vector.broadcast %cst_83 : f32 to vector<12x256xf32>
    %140 = arith.select %138, %129, %139 : vector<12x256xi1>, vector<12x256xf32>
    %c24_84 = arith.constant 24 : index
    %c0_85 = arith.constant 0 : index
    %141 = vector.load %arg18[%c24_84, %c0_85] : memref<144x256xf32, #tpu.memory_space<vmem>>, vector<12x256xf32>
    tpu.vector_store %arg18[%c24_84, %c0_85], %140 {strides = array<i32>} : memref<144x256xf32, #tpu.memory_space<vmem>>, vector<12x256xf32>,
    %c0_86 = arith.constant 0 : index
    %c126 = arith.constant 126 : index
    %142 = vector.load %arg17[%c0_86, %c126] : memref<16x512xf32, #tpu.memory_space<vmem>>, vector<12x256xf32>
    %c-2_i32_87 = arith.constant -2 : i32
    %143 = vector.broadcast %c-2_i32_87 : i32 to vector<1x256xi32>
    %144 = arith.addi %5, %143 : vector<1x256xi32>
    %c0_i32_88 = arith.constant 0 : i32
    %145 = vector.broadcast %c0_i32_88 : i32 to vector<1x256xi32>
    %146 = arith.cmpi sge, %144, %145 : vector<1x256xi32>
    %c16_i32_89 = arith.constant 16 : i32
    %147 = vector.broadcast %c16_i32_89 : i32 to vector<1x256xi32>
    %148 = arith.cmpi slt, %144, %147 : vector<1x256xi32>
    %149 = arith.andi %146, %148 : vector<1x256xi1>
    %cst_90 = arith.constant 0.000000e+00 : f32
    %150 = vector.shape_cast %149 : vector<1x256xi1> to vector<1x256xi1>
    %151 = vector.broadcast %150 : vector<1x256xi1> to vector<12x256xi1>
    %152 = vector.broadcast %cst_90 : f32 to vector<12x256xf32>
    %153 = arith.select %151, %142, %152 : vector<12x256xi1>, vector<12x256xf32>
    %c36 = arith.constant 36 : index
    %c0_91 = arith.constant 0 : index
    %154 = vector.load %arg18[%c36, %c0_91] : memref<144x256xf32, #tpu.memory_space<vmem>>, vector<12x256xf32>
    tpu.vector_store %arg18[%c36, %c0_91], %153 {strides = array<i32>} : memref<144x256xf32, #tpu.memory_space<vmem>>, vector<12x256xf32>,
    %c0_92 = arith.constant 0 : index
    %c128_93 = arith.constant 128 : index
    %155 = vector.load %arg17[%c0_92, %c128_93] : memref<16x512xf32, #tpu.memory_space<vmem>>, vector<12x256xf32>
    %c48_94 = arith.constant 48 : index
    %c0_95 = arith.constant 0 : index
    %156 = vector.load %arg18[%c48_94, %c0_95] : memref<144x256xf32, #tpu.memory_space<vmem>>, vector<12x256xf32>
    tpu.vector_store %arg18[%c48_94, %c0_95], %155 {strides = array<i32>} : memref<144x256xf32, #tpu.memory_space<vmem>>, vector<12x256xf32>,
    %c0_96 = arith.constant 0 : index
    %c130 = arith.constant 130 : index
    %157 = vector.load %arg17[%c0_96, %c130] : memref<16x512xf32, #tpu.memory_space<vmem>>, vector<12x256xf32>
    %c2_i32_97 = arith.constant 2 : i32
    %158 = vector.broadcast %c2_i32_97 : i32 to vector<1x256xi32>
    %159 = arith.addi %5, %158 : vector<1x256xi32>
    %c0_i32_98 = arith.constant 0 : i32
    %160 = vector.broadcast %c0_i32_98 : i32 to vector<1x256xi32>
    %161 = arith.cmpi sge, %159, %160 : vector<1x256xi32>
    %c16_i32_99 = arith.constant 16 : i32
    %162 = vector.broadcast %c16_i32_99 : i32 to vector<1x256xi32>
    %163 = arith.cmpi slt, %159, %162 : vector<1x256xi32>
    %164 = arith.andi %161, %163 : vector<1x256xi1>
    %cst_100 = arith.constant 0.000000e+00 : f32
    %165 = vector.shape_cast %164 : vector<1x256xi1> to vector<1x256xi1>
    %166 = vector.broadcast %165 : vector<1x256xi1> to vector<12x256xi1>
    %167 = vector.broadcast %cst_100 : f32 to vector<12x256xf32>
    %168 = arith.select %166, %157, %167 : vector<12x256xi1>, vector<12x256xf32>
    %c60 = arith.constant 60 : index
    %c0_101 = arith.constant 0 : index
    %169 = vector.load %arg18[%c60, %c0_101] : memref<144x256xf32, #tpu.memory_space<vmem>>, vector<12x256xf32>
    tpu.vector_store %arg18[%c60, %c0_101], %168 {strides = array<i32>} : memref<144x256xf32, #tpu.memory_space<vmem>>, vector<12x256xf32>,
    %c0_102 = arith.constant 0 : index
    %c158 = arith.constant 158 : index
    %170 = vector.load %arg17[%c0_102, %c158] : memref<16x512xf32, #tpu.memory_space<vmem>>, vector<12x256xf32>
    %c-2_i32_103 = arith.constant -2 : i32
    %171 = vector.broadcast %c-2_i32_103 : i32 to vector<1x256xi32>
    %172 = arith.addi %5, %171 : vector<1x256xi32>
    %c0_i32_104 = arith.constant 0 : i32
    %173 = vector.broadcast %c0_i32_104 : i32 to vector<1x256xi32>
    %174 = arith.cmpi sge, %172, %173 : vector<1x256xi32>
    %c16_i32_105 = arith.constant 16 : i32
    %175 = vector.broadcast %c16_i32_105 : i32 to vector<1x256xi32>
    %176 = arith.cmpi slt, %172, %175 : vector<1x256xi32>
    %177 = arith.andi %174, %176 : vector<1x256xi1>
    %cst_106 = arith.constant 0.000000e+00 : f32
    %178 = vector.shape_cast %177 : vector<1x256xi1> to vector<1x256xi1>
    %179 = vector.broadcast %178 : vector<1x256xi1> to vector<12x256xi1>
    %180 = vector.broadcast %cst_106 : f32 to vector<12x256xf32>
    %181 = arith.select %179, %170, %180 : vector<12x256xi1>, vector<12x256xf32>
    %c72 = arith.constant 72 : index
    %c0_107 = arith.constant 0 : index
    %182 = vector.load %arg18[%c72, %c0_107] : memref<144x256xf32, #tpu.memory_space<vmem>>, vector<12x256xf32>
    tpu.vector_store %arg18[%c72, %c0_107], %181 {strides = array<i32>} : memref<144x256xf32, #tpu.memory_space<vmem>>, vector<12x256xf32>,
    %c0_108 = arith.constant 0 : index
    %c160 = arith.constant 160 : index
    %183 = vector.load %arg17[%c0_108, %c160] : memref<16x512xf32, #tpu.memory_space<vmem>>, vector<12x256xf32>
    %c84 = arith.constant 84 : index
    %c0_109 = arith.constant 0 : index
    %184 = vector.load %arg18[%c84, %c0_109] : memref<144x256xf32, #tpu.memory_space<vmem>>, vector<12x256xf32>
    tpu.vector_store %arg18[%c84, %c0_109], %183 {strides = array<i32>} : memref<144x256xf32, #tpu.memory_space<vmem>>, vector<12x256xf32>,
    %c0_110 = arith.constant 0 : index
    %c162 = arith.constant 162 : index
    %185 = vector.load %arg17[%c0_110, %c162] : memref<16x512xf32, #tpu.memory_space<vmem>>, vector<12x256xf32>
    %c2_i32_111 = arith.constant 2 : i32
    %186 = vector.broadcast %c2_i32_111 : i32 to vector<1x256xi32>
    %187 = arith.addi %5, %186 : vector<1x256xi32>
    %c0_i32_112 = arith.constant 0 : i32
    %188 = vector.broadcast %c0_i32_112 : i32 to vector<1x256xi32>
    %189 = arith.cmpi sge, %187, %188 : vector<1x256xi32>
    %c16_i32_113 = arith.constant 16 : i32
    %190 = vector.broadcast %c16_i32_113 : i32 to vector<1x256xi32>
    %191 = arith.cmpi slt, %187, %190 : vector<1x256xi32>
    %192 = arith.andi %189, %191 : vector<1x256xi1>
    %cst_114 = arith.constant 0.000000e+00 : f32
    %193 = vector.shape_cast %192 : vector<1x256xi1> to vector<1x256xi1>
    %194 = vector.broadcast %193 : vector<1x256xi1> to vector<12x256xi1>
    %195 = vector.broadcast %cst_114 : f32 to vector<12x256xf32>
    %196 = arith.select %194, %185, %195 : vector<12x256xi1>, vector<12x256xf32>
    %c96_115 = arith.constant 96 : index
    %c0_116 = arith.constant 0 : index
    %197 = vector.load %arg18[%c96_115, %c0_116] : memref<144x256xf32, #tpu.memory_space<vmem>>, vector<12x256xf32>
    tpu.vector_store %arg18[%c96_115, %c0_116], %196 {strides = array<i32>} : memref<144x256xf32, #tpu.memory_space<vmem>>, vector<12x256xf32>,
    %c0_117 = arith.constant 0 : index
    %c0_118 = arith.constant 0 : index
    %198 = vector.load %arg8[%c0_117, %c0_118] : memref<4x108xf32, #tpu.memory_space<vmem>>, vector<4x108xf32>
    %c0_119 = arith.constant 0 : index
    %c0_120 = arith.constant 0 : index
    %199 = vector.load %arg18[%c0_119, %c0_120] : memref<144x256xf32, #tpu.memory_space<vmem>>, vector<108x256xf32>
    %cst_121 = arith.constant dense<0.000000e+00> : vector<4x256xf32>
    %200 = tpu.matmul %198, %199, %cst_121 {dimension_numbers = #tpu.dot_dimension_numbers<[1], [0], [0], [1], [0, 0, 1, 1], [], []>} : vector<4x108xf32>, vector<108x256xf32>, vector<4x256xf32> -> vector<4x256xf32>
    %c12_122 = arith.constant 12 : index
    %c0_123 = arith.constant 0 : index
    %201 = vector.load %arg16[%c12_122, %c0_123] : memref<20x256xf32, #tpu.memory_space<vmem>>, vector<4x256xf32>
    tpu.vector_store %arg16[%c12_122, %c0_123], %200 {strides = array<i32>} : memref<20x256xf32, #tpu.memory_space<vmem>>, vector<4x256xf32>,
    %c0_124 = arith.constant 0 : index
    %c0_125 = arith.constant 0 : index
    %202 = vector.load %arg16[%c0_124, %c0_125] : memref<20x256xf32, #tpu.memory_space<vmem>>, vector<16x256xf32>
    %c0_126 = arith.constant 0 : index
    %c0_127 = arith.constant 0 : index
    %203 = vector.load %arg9[%c0_126, %c0_127] : memref<16x1xf32, #tpu.memory_space<vmem>>, vector<16x1xf32>
    %204 = vector.broadcast %203 : vector<16x1xf32> to vector<16x256xf32>
    %205 = arith.mulf %202, %204 : vector<16x256xf32>
    %c0_128 = arith.constant 0 : index
    %c0_129 = arith.constant 0 : index
    %206 = vector.load %arg10[%c0_128, %c0_129] : memref<16x1xf32, #tpu.memory_space<vmem>>, vector<16x1xf32>
    %207 = vector.broadcast %206 : vector<16x1xf32> to vector<16x256xf32>
    %208 = arith.addf %205, %207 : vector<16x256xf32>
    %cst_130 = arith.constant 0.000000e+00 : f32
    %209 = vector.broadcast %cst_130 : f32 to vector<16x256xf32>
    %210 = arith.maximumf %208, %209 : vector<16x256xf32>
    %c0_131 = arith.constant 0 : index
    %c128_132 = arith.constant 128 : index
    %211 = vector.load %arg17[%c0_131, %c128_132] : memref<16x512xf32, #tpu.memory_space<vmem>>, vector<16x256xf32>
    tpu.vector_store %arg17[%c0_131, %c128_132], %210 {strides = array<i32>} : memref<16x512xf32, #tpu.memory_space<vmem>>, vector<16x256xf32>,
    %c0_133 = arith.constant 0 : index
    %c77 = arith.constant 77 : index
    %212 = vector.load %arg17[%c0_133, %c77] : memref<16x512xf32, #tpu.memory_space<vmem>>, vector<16x256xf32>
    %c-3_i32 = arith.constant -3 : i32
    %213 = vector.broadcast %c-3_i32 : i32 to vector<1x256xi32>
    %214 = arith.addi %5, %213 : vector<1x256xi32>
    %c0_i32_134 = arith.constant 0 : i32
    %215 = vector.broadcast %c0_i32_134 : i32 to vector<1x256xi32>
    %216 = arith.cmpi sge, %214, %215 : vector<1x256xi32>
    %c16_i32_135 = arith.constant 16 : i32
    %217 = vector.broadcast %c16_i32_135 : i32 to vector<1x256xi32>
    %218 = arith.cmpi slt, %214, %217 : vector<1x256xi32>
    %219 = arith.andi %216, %218 : vector<1x256xi1>
    %cst_136 = arith.constant 0.000000e+00 : f32
    %220 = vector.shape_cast %219 : vector<1x256xi1> to vector<1x256xi1>
    %221 = vector.broadcast %220 : vector<1x256xi1> to vector<16x256xi1>
    %222 = vector.broadcast %cst_136 : f32 to vector<16x256xf32>
    %223 = arith.select %221, %212, %222 : vector<16x256xi1>, vector<16x256xf32>
    %c0_137 = arith.constant 0 : index
    %c0_138 = arith.constant 0 : index
    %224 = vector.load %arg18[%c0_137, %c0_138] : memref<144x256xf32, #tpu.memory_space<vmem>>, vector<16x256xf32>
    tpu.vector_store %arg18[%c0_137, %c0_138], %223 {strides = array<i32>} : memref<144x256xf32, #tpu.memory_space<vmem>>, vector<16x256xf32>,
    %c0_139 = arith.constant 0 : index
    %c80 = arith.constant 80 : index
    %225 = vector.load %arg17[%c0_139, %c80] : memref<16x512xf32, #tpu.memory_space<vmem>>, vector<16x256xf32>
    %c16_140 = arith.constant 16 : index
    %c0_141 = arith.constant 0 : index
    %226 = vector.load %arg18[%c16_140, %c0_141] : memref<144x256xf32, #tpu.memory_space<vmem>>, vector<16x256xf32>
    tpu.vector_store %arg18[%c16_140, %c0_141], %225 {strides = array<i32>} : memref<144x256xf32, #tpu.memory_space<vmem>>, vector<16x256xf32>,
    %c0_142 = arith.constant 0 : index
    %c83 = arith.constant 83 : index
    %227 = vector.load %arg17[%c0_142, %c83] : memref<16x512xf32, #tpu.memory_space<vmem>>, vector<16x256xf32>
    %c3_i32 = arith.constant 3 : i32
    %228 = vector.broadcast %c3_i32 : i32 to vector<1x256xi32>
    %229 = arith.addi %5, %228 : vector<1x256xi32>
    %c0_i32_143 = arith.constant 0 : i32
    %230 = vector.broadcast %c0_i32_143 : i32 to vector<1x256xi32>
    %231 = arith.cmpi sge, %229, %230 : vector<1x256xi32>
    %c16_i32_144 = arith.constant 16 : i32
    %232 = vector.broadcast %c16_i32_144 : i32 to vector<1x256xi32>
    %233 = arith.cmpi slt, %229, %232 : vector<1x256xi32>
    %234 = arith.andi %231, %233 : vector<1x256xi1>
    %cst_145 = arith.constant 0.000000e+00 : f32
    %235 = vector.shape_cast %234 : vector<1x256xi1> to vector<1x256xi1>
    %236 = vector.broadcast %235 : vector<1x256xi1> to vector<16x256xi1>
    %237 = vector.broadcast %cst_145 : f32 to vector<16x256xf32>
    %238 = arith.select %236, %227, %237 : vector<16x256xi1>, vector<16x256xf32>
    %c32_146 = arith.constant 32 : index
    %c0_147 = arith.constant 0 : index
    %239 = vector.load %arg18[%c32_146, %c0_147] : memref<144x256xf32, #tpu.memory_space<vmem>>, vector<16x256xf32>
    tpu.vector_store %arg18[%c32_146, %c0_147], %238 {strides = array<i32>} : memref<144x256xf32, #tpu.memory_space<vmem>>, vector<16x256xf32>,
    %c0_148 = arith.constant 0 : index
    %c125 = arith.constant 125 : index
    %240 = vector.load %arg17[%c0_148, %c125] : memref<16x512xf32, #tpu.memory_space<vmem>>, vector<16x256xf32>
    %c-3_i32_149 = arith.constant -3 : i32
    %241 = vector.broadcast %c-3_i32_149 : i32 to vector<1x256xi32>
    %242 = arith.addi %5, %241 : vector<1x256xi32>
    %c0_i32_150 = arith.constant 0 : i32
    %243 = vector.broadcast %c0_i32_150 : i32 to vector<1x256xi32>
    %244 = arith.cmpi sge, %242, %243 : vector<1x256xi32>
    %c16_i32_151 = arith.constant 16 : i32
    %245 = vector.broadcast %c16_i32_151 : i32 to vector<1x256xi32>
    %246 = arith.cmpi slt, %242, %245 : vector<1x256xi32>
    %247 = arith.andi %244, %246 : vector<1x256xi1>
    %cst_152 = arith.constant 0.000000e+00 : f32
    %248 = vector.shape_cast %247 : vector<1x256xi1> to vector<1x256xi1>
    %249 = vector.broadcast %248 : vector<1x256xi1> to vector<16x256xi1>
    %250 = vector.broadcast %cst_152 : f32 to vector<16x256xf32>
    %251 = arith.select %249, %240, %250 : vector<16x256xi1>, vector<16x256xf32>
    %c48_153 = arith.constant 48 : index
    %c0_154 = arith.constant 0 : index
    %252 = vector.load %arg18[%c48_153, %c0_154] : memref<144x256xf32, #tpu.memory_space<vmem>>, vector<16x256xf32>
    tpu.vector_store %arg18[%c48_153, %c0_154], %251 {strides = array<i32>} : memref<144x256xf32, #tpu.memory_space<vmem>>, vector<16x256xf32>,
    %c0_155 = arith.constant 0 : index
    %c128_156 = arith.constant 128 : index
    %253 = vector.load %arg17[%c0_155, %c128_156] : memref<16x512xf32, #tpu.memory_space<vmem>>, vector<16x256xf32>
    %c64_157 = arith.constant 64 : index
    %c0_158 = arith.constant 0 : index
    %254 = vector.load %arg18[%c64_157, %c0_158] : memref<144x256xf32, #tpu.memory_space<vmem>>, vector<16x256xf32>
    tpu.vector_store %arg18[%c64_157, %c0_158], %253 {strides = array<i32>} : memref<144x256xf32, #tpu.memory_space<vmem>>, vector<16x256xf32>,
    %c0_159 = arith.constant 0 : index
    %c131 = arith.constant 131 : index
    %255 = vector.load %arg17[%c0_159, %c131] : memref<16x512xf32, #tpu.memory_space<vmem>>, vector<16x256xf32>
    %c3_i32_160 = arith.constant 3 : i32
    %256 = vector.broadcast %c3_i32_160 : i32 to vector<1x256xi32>
    %257 = arith.addi %5, %256 : vector<1x256xi32>
    %c0_i32_161 = arith.constant 0 : i32
    %258 = vector.broadcast %c0_i32_161 : i32 to vector<1x256xi32>
    %259 = arith.cmpi sge, %257, %258 : vector<1x256xi32>
    %c16_i32_162 = arith.constant 16 : i32
    %260 = vector.broadcast %c16_i32_162 : i32 to vector<1x256xi32>
    %261 = arith.cmpi slt, %257, %260 : vector<1x256xi32>
    %262 = arith.andi %259, %261 : vector<1x256xi1>
    %cst_163 = arith.constant 0.000000e+00 : f32
    %263 = vector.shape_cast %262 : vector<1x256xi1> to vector<1x256xi1>
    %264 = vector.broadcast %263 : vector<1x256xi1> to vector<16x256xi1>
    %265 = vector.broadcast %cst_163 : f32 to vector<16x256xf32>
    %266 = arith.select %264, %255, %265 : vector<16x256xi1>, vector<16x256xf32>
    %c80_164 = arith.constant 80 : index
    %c0_165 = arith.constant 0 : index
    %267 = vector.load %arg18[%c80_164, %c0_165] : memref<144x256xf32, #tpu.memory_space<vmem>>, vector<16x256xf32>
    tpu.vector_store %arg18[%c80_164, %c0_165], %266 {strides = array<i32>} : memref<144x256xf32, #tpu.memory_space<vmem>>, vector<16x256xf32>,
    %c0_166 = arith.constant 0 : index
    %c173 = arith.constant 173 : index
    %268 = vector.load %arg17[%c0_166, %c173] : memref<16x512xf32, #tpu.memory_space<vmem>>, vector<16x256xf32>
    %c-3_i32_167 = arith.constant -3 : i32
    %269 = vector.broadcast %c-3_i32_167 : i32 to vector<1x256xi32>
    %270 = arith.addi %5, %269 : vector<1x256xi32>
    %c0_i32_168 = arith.constant 0 : i32
    %271 = vector.broadcast %c0_i32_168 : i32 to vector<1x256xi32>
    %272 = arith.cmpi sge, %270, %271 : vector<1x256xi32>
    %c16_i32_169 = arith.constant 16 : i32
    %273 = vector.broadcast %c16_i32_169 : i32 to vector<1x256xi32>
    %274 = arith.cmpi slt, %270, %273 : vector<1x256xi32>
    %275 = arith.andi %272, %274 : vector<1x256xi1>
    %cst_170 = arith.constant 0.000000e+00 : f32
    %276 = vector.shape_cast %275 : vector<1x256xi1> to vector<1x256xi1>
    %277 = vector.broadcast %276 : vector<1x256xi1> to vector<16x256xi1>
    %278 = vector.broadcast %cst_170 : f32 to vector<16x256xf32>
    %279 = arith.select %277, %268, %278 : vector<16x256xi1>, vector<16x256xf32>
    %c96_171 = arith.constant 96 : index
    %c0_172 = arith.constant 0 : index
    %280 = vector.load %arg18[%c96_171, %c0_172] : memref<144x256xf32, #tpu.memory_space<vmem>>, vector<16x256xf32>
    tpu.vector_store %arg18[%c96_171, %c0_172], %279 {strides = array<i32>} : memref<144x256xf32, #tpu.memory_space<vmem>>, vector<16x256xf32>,
    %c0_173 = arith.constant 0 : index
    %c176 = arith.constant 176 : index
    %281 = vector.load %arg17[%c0_173, %c176] : memref<16x512xf32, #tpu.memory_space<vmem>>, vector<16x256xf32>
    %c112_174 = arith.constant 112 : index
    %c0_175 = arith.constant 0 : index
    %282 = vector.load %arg18[%c112_174, %c0_175] : memref<144x256xf32, #tpu.memory_space<vmem>>, vector<16x256xf32>
    tpu.vector_store %arg18[%c112_174, %c0_175], %281 {strides = array<i32>} : memref<144x256xf32, #tpu.memory_space<vmem>>, vector<16x256xf32>,
    %c0_176 = arith.constant 0 : index
    %c179 = arith.constant 179 : index
    %283 = vector.load %arg17[%c0_176, %c179] : memref<16x512xf32, #tpu.memory_space<vmem>>, vector<16x256xf32>
    %c3_i32_177 = arith.constant 3 : i32
    %284 = vector.broadcast %c3_i32_177 : i32 to vector<1x256xi32>
    %285 = arith.addi %5, %284 : vector<1x256xi32>
    %c0_i32_178 = arith.constant 0 : i32
    %286 = vector.broadcast %c0_i32_178 : i32 to vector<1x256xi32>
    %287 = arith.cmpi sge, %285, %286 : vector<1x256xi32>
    %c16_i32_179 = arith.constant 16 : i32
    %288 = vector.broadcast %c16_i32_179 : i32 to vector<1x256xi32>
    %289 = arith.cmpi slt, %285, %288 : vector<1x256xi32>
    %290 = arith.andi %287, %289 : vector<1x256xi1>
    %cst_180 = arith.constant 0.000000e+00 : f32
    %291 = vector.shape_cast %290 : vector<1x256xi1> to vector<1x256xi1>
    %292 = vector.broadcast %291 : vector<1x256xi1> to vector<16x256xi1>
    %293 = vector.broadcast %cst_180 : f32 to vector<16x256xf32>
    %294 = arith.select %292, %283, %293 : vector<16x256xi1>, vector<16x256xf32>
    %c128_181 = arith.constant 128 : index
    %c0_182 = arith.constant 0 : index
    %295 = vector.load %arg18[%c128_181, %c0_182] : memref<144x256xf32, #tpu.memory_space<vmem>>, vector<16x256xf32>
    tpu.vector_store %arg18[%c128_181, %c0_182], %294 {strides = array<i32>} : memref<144x256xf32, #tpu.memory_space<vmem>>, vector<16x256xf32>,
    %c0_183 = arith.constant 0 : index
    %c0_184 = arith.constant 0 : index
    %296 = vector.load %arg11[%c0_183, %c0_184] : memref<4x144xf32, #tpu.memory_space<vmem>>, vector<4x144xf32>
    %c0_185 = arith.constant 0 : index
    %c0_186 = arith.constant 0 : index
    %297 = vector.load %arg18[%c0_185, %c0_186] : memref<144x256xf32, #tpu.memory_space<vmem>>, vector<144x256xf32>
    %cst_187 = arith.constant dense<0.000000e+00> : vector<4x256xf32>
    %298 = tpu.matmul %296, %297, %cst_187 {dimension_numbers = #tpu.dot_dimension_numbers<[1], [0], [0], [1], [0, 0, 1, 1], [], []>} : vector<4x144xf32>, vector<144x256xf32>, vector<4x256xf32> -> vector<4x256xf32>
    %c16_188 = arith.constant 16 : index
    %c0_189 = arith.constant 0 : index
    %299 = vector.load %arg16[%c16_188, %c0_189] : memref<20x256xf32, #tpu.memory_space<vmem>>, vector<4x256xf32>
    tpu.vector_store %arg16[%c16_188, %c0_189], %298 {strides = array<i32>} : memref<20x256xf32, #tpu.memory_space<vmem>>, vector<4x256xf32>,
    %c0_190 = arith.constant 0 : index
    %c0_191 = arith.constant 0 : index
    %300 = vector.load %arg16[%c0_190, %c0_191] : memref<20x256xf32, #tpu.memory_space<vmem>>, vector<20x256xf32>
    %c0_192 = arith.constant 0 : index
    %c0_193 = arith.constant 0 : index
    %301 = vector.load %arg12[%c0_192, %c0_193] : memref<20x1xf32, #tpu.memory_space<vmem>>, vector<20x1xf32>
    %302 = vector.broadcast %301 : vector<20x1xf32> to vector<20x256xf32>
    %303 = arith.mulf %300, %302 : vector<20x256xf32>
    %c0_194 = arith.constant 0 : index
    %c0_195 = arith.constant 0 : index
    %304 = vector.load %arg13[%c0_194, %c0_195] : memref<20x1xf32, #tpu.memory_space<vmem>>, vector<20x1xf32>
    %305 = vector.broadcast %304 : vector<20x1xf32> to vector<20x256xf32>
    %306 = arith.addf %303, %305 : vector<20x256xf32>
    %cst_196 = arith.constant 0.000000e+00 : f32
    %307 = vector.broadcast %cst_196 : f32 to vector<20x256xf32>
    %308 = arith.maximumf %306, %307 : vector<20x256xf32>
    %c0_197 = arith.constant 0 : index
    %c0_198 = arith.constant 0 : index
    %309 = vector.load %arg14[%c0_197, %c0_198] : memref<16x20xf32, #tpu.memory_space<vmem>>, vector<16x20xf32>
    %cst_199 = arith.constant dense<0.000000e+00> : vector<16x256xf32>
    %310 = tpu.matmul %309, %308, %cst_199 {dimension_numbers = #tpu.dot_dimension_numbers<[1], [0], [0], [1], [0, 0, 1, 1], [], []>} : vector<16x20xf32>, vector<20x256xf32>, vector<16x256xf32> -> vector<16x256xf32>
    %cst_200 = arith.constant 0.000000e+00 : f32
    %311 = vector.broadcast %cst_200 : f32 to vector<16x256xf32>
    %312 = arith.maximumf %310, %311 : vector<16x256xf32>
    %c0_201 = arith.constant 0 : index
    %c0_202 = arith.constant 0 : index
    %c0_203 = arith.constant 0 : index
    %313 = vector.load %arg15[%c0_201, %c0_202, %c0_203] : memref<1x16x256xf32, #tpu.memory_space<vmem>>, vector<1x16x256xf32>
    %314 = vector.shape_cast %313 : vector<1x16x256xf32> to vector<16x256xf32>
    %315 = vector.shape_cast %312 : vector<16x256xf32> to vector<1x16x256xf32>
    tpu.vector_store %arg15[%c0_201, %c0_202, %c0_203], %315 {strides = array<i32>} : memref<1x16x256xf32, #tpu.memory_space<vmem>>, vector<1x16x256xf32>,
    return
  }
  func.func @transform_0(%arg0: i32) -> (i32, i32, i32) {
    %c0_i32 = arith.constant 0 : i32
    %c0_i32_0 = arith.constant 0 : i32
    %c0_i32_1 = arith.constant 0 : i32
    return %arg0, %c0_i32, %c0_i32_0 : i32, i32, i32
  }
  func.func @transform_1(%arg0: i32) -> (i32, i32) {
    %c0_i32 = arith.constant 0 : i32
    %c0_i32_0 = arith.constant 0 : i32
    %c0_i32_1 = arith.constant 0 : i32
    return %c0_i32, %c0_i32_0 : i32, i32
  }
  func.func @transform_2(%arg0: i32) -> (i32, i32) {
    %c0_i32 = arith.constant 0 : i32
    %c0_i32_0 = arith.constant 0 : i32
    %c0_i32_1 = arith.constant 0 : i32
    return %c0_i32, %c0_i32_0 : i32, i32
  }
  func.func @transform_3(%arg0: i32) -> (i32, i32) {
    %c0_i32 = arith.constant 0 : i32
    %c0_i32_0 = arith.constant 0 : i32
    %c0_i32_1 = arith.constant 0 : i32
    return %c0_i32, %c0_i32_0 : i32, i32
  }
  func.func @transform_4(%arg0: i32) -> (i32, i32) {
    %c0_i32 = arith.constant 0 : i32
    %c0_i32_0 = arith.constant 0 : i32
    %c0_i32_1 = arith.constant 0 : i32
    return %c0_i32, %c0_i32_0 : i32, i32
  }
  func.func @transform_5(%arg0: i32) -> (i32, i32) {
    %c0_i32 = arith.constant 0 : i32
    %c0_i32_0 = arith.constant 0 : i32
    %c0_i32_1 = arith.constant 0 : i32
    return %c0_i32, %c0_i32_0 : i32, i32
  }
  func.func @transform_6(%arg0: i32) -> (i32, i32) {
    %c0_i32 = arith.constant 0 : i32
    %c0_i32_0 = arith.constant 0 : i32
    %c0_i32_1 = arith.constant 0 : i32
    return %c0_i32, %c0_i32_0 : i32, i32
  }
  func.func @transform_7(%arg0: i32) -> (i32, i32) {
    %c0_i32 = arith.constant 0 : i32
    %c0_i32_0 = arith.constant 0 : i32
    %c0_i32_1 = arith.constant 0 : i32
    return %c0_i32, %c0_i32_0 : i32, i32
  }
  func.func @transform_8(%arg0: i32) -> (i32, i32) {
    %c0_i32 = arith.constant 0 : i32
    %c0_i32_0 = arith.constant 0 : i32
    %c0_i32_1 = arith.constant 0 : i32
    return %c0_i32, %c0_i32_0 : i32, i32
  }
  func.func @transform_9(%arg0: i32) -> (i32, i32) {
    %c0_i32 = arith.constant 0 : i32
    %c0_i32_0 = arith.constant 0 : i32
    %c0_i32_1 = arith.constant 0 : i32
    return %c0_i32, %c0_i32_0 : i32, i32
  }
  func.func @transform_10(%arg0: i32) -> (i32, i32) {
    %c0_i32 = arith.constant 0 : i32
    %c0_i32_0 = arith.constant 0 : i32
    %c0_i32_1 = arith.constant 0 : i32
    return %c0_i32, %c0_i32_0 : i32, i32
  }
  func.func @transform_11(%arg0: i32) -> (i32, i32) {
    %c0_i32 = arith.constant 0 : i32
    %c0_i32_0 = arith.constant 0 : i32
    %c0_i32_1 = arith.constant 0 : i32
    return %c0_i32, %c0_i32_0 : i32, i32
  }
  func.func @transform_12(%arg0: i32) -> (i32, i32) {
    %c0_i32 = arith.constant 0 : i32
    %c0_i32_0 = arith.constant 0 : i32
    %c0_i32_1 = arith.constant 0 : i32
    return %c0_i32, %c0_i32_0 : i32, i32
  }
  func.func @transform_13(%arg0: i32) -> (i32, i32) {
    %c0_i32 = arith.constant 0 : i32
    %c0_i32_0 = arith.constant 0 : i32
    %c0_i32_1 = arith.constant 0 : i32
    return %c0_i32, %c0_i32_0 : i32, i32
  }
  func.func @transform_14(%arg0: i32) -> (i32, i32, i32) {
    %c0_i32 = arith.constant 0 : i32
    %c0_i32_0 = arith.constant 0 : i32
    %c0_i32_1 = arith.constant 0 : i32
    return %arg0, %c0_i32, %c0_i32_0 : i32, i32, i32
  }
}

</mosaic_0001>

<llo_original>
// kernel: dense_ddcb_forward.1
$region0: #{dense_ddcb_forward.1}
  #allocation0 [shape = 'u32[]', space=smem, size = 0x4, offset = 0x4, fixed_abs, tag = 'smem constant byte address 0x4 - core index']
  #allocation1 [shape = 'u32[144,128]{1,0:T(1,128)}', space=vmem, size = 0x12000, scoped, tag = 'internal scratch']
  #allocation2 [shape = 'f32[20,256]{1,0:T(8,128)}', space=vmem, size = 0x6000, scoped, tag = 'scratch operand']
  #allocation3 [shape = 'f32[16,512]{1,0:T(8,128)}', space=vmem, size = 0x8000, scoped, tag = 'scratch operand']
  #allocation4 [shape = 'f32[144,256]{1,0:T(8,128)}', space=vmem, size = 0x24000, scoped, tag = 'scratch operand']
  %s0 = inlined_call_operand.vmem [shape: f32[2,8,256], index: 0, kind: input, shape index: {}]
  %s1 = inlined_call_operand.vmem [shape: s32[1,256], index: 1, kind: input, shape index: {}]
  %s2 = inlined_call_operand.vmem [shape: f32[8,1], index: 2, kind: input, shape index: {}]
  %s3 = inlined_call_operand.vmem [shape: f32[8,1], index: 3, kind: input, shape index: {}]
  %s4 = inlined_call_operand.vmem [shape: f32[4,72], index: 4, kind: input, shape index: {}]
  %s5 = inlined_call_operand.vmem [shape: f32[12,1], index: 5, kind: input, shape index: {}]
  %s6 = inlined_call_operand.vmem [shape: f32[12,1], index: 6, kind: input, shape index: {}]
  %s7 = inlined_call_operand.vmem [shape: f32[4,108], index: 7, kind: input, shape index: {}]
  %s8 = inlined_call_operand.vmem [shape: f32[16,1], index: 8, kind: input, shape index: {}]
  %s9 = inlined_call_operand.vmem [shape: f32[16,1], index: 9, kind: input, shape index: {}]
  %s10 = inlined_call_operand.vmem [shape: f32[4,144], index: 10, kind: input, shape index: {}]
  %s11 = inlined_call_operand.vmem [shape: f32[20,1], index: 11, kind: input, shape index: {}]
  %s12 = inlined_call_operand.vmem [shape: f32[20,1], index: 12, kind: input, shape index: {}]
  %s13 = inlined_call_operand.vmem [shape: f32[16,20], index: 13, kind: input, shape index: {}]
  %s14 = inlined_call_operand.vmem [shape: f32[2,16,256], index: 14, kind: output, shape index: {}]
  %s15 = sld [smem:[#allocation0]]
  $region89: #{dense_ddcb_forward.1} parent=0
    _
  %s17 = ssub.s32 1, %s15
  %s18 = scalar_select 0, %s17, %s15
  loop: start=0, step=1, limit=4
  $region2: #{dense_ddcb_forward.1} parent=0 // loop_pre_header
    _
  $region3: #{dense_ddcb_forward.1} parent=0 // loop_header
    %s20 = sphi 0, %s24
    %p21 = scmp.ge.s32.totalorder %s20, 4
    %s30 = sphi 0, %s32
    %s33 = sphi 0, %s30
    %s34 = sphi 0, %s33
    %s50 = sphi 0, %s34
    %s54 = sphi 0, %s54
    %s56 = sphi 0, %s54
    %s57 = sphi 0, %s56
    %s71 = sphi 0, %s57
    %s75 = sphi 0, %s75
    %s77 = sphi 0, %s75
    %s78 = sphi 0, %s77
    %s92 = sphi 0, %s78
    %s96 = sphi 0, %s96
    %s98 = sphi 0, %s96
    %s99 = sphi 0, %s98
    %s113 = sphi 0, %s99
    %s117 = sphi 0, %s117
    %s119 = sphi 0, %s117
    %s120 = sphi 0, %s119
    %s134 = sphi 0, %s120
    %s138 = sphi 0, %s138
    %s140 = sphi 0, %s138
    %s141 = sphi 0, %s140
    %s155 = sphi 0, %s141
    %s159 = sphi 0, %s159
    %s161 = sphi 0, %s159
    %s162 = sphi 0, %s161
    %s176 = sphi 0, %s162
    %s180 = sphi 0, %s180
    %s182 = sphi 0, %s180
    %s183 = sphi 0, %s182
    %s197 = sphi 0, %s183
    %s201 = sphi 0, %s201
    %s203 = sphi 0, %s201
    %s204 = sphi 0, %s203
    %s218 = sphi 0, %s204
    %s222 = sphi 0, %s222
    %s224 = sphi 0, %s222
    %s225 = sphi 0, %s224
    %s239 = sphi 0, %s225
    %s243 = sphi 0, %s243
    %s245 = sphi 0, %s243
    %s246 = sphi 0, %s245
    %s260 = sphi 0, %s246
    %s264 = sphi 0, %s264
    %s266 = sphi 0, %s264
    %s267 = sphi 0, %s266
    %s281 = sphi 0, %s267
    %s285 = sphi 0, %s285
    %s287 = sphi 0, %s285
    %s288 = sphi 0, %s287
    %s302 = sphi 0, %s288
    %s306 = sphi 0, %s306
    %s308 = sphi 0, %s306
    %s309 = sphi 0, %s308
    %s323 = sphi 0, %s309
    %s329 = sphi 0, %s331
    %s332 = sphi 0, %s329
    %s333 = sphi 0, %s332
    %s349 = sphi 0, %s333
  $region4: #{dense_ddcb_forward.1} parent=0 // loop_header_branch
    %23 = sbr.rel (%p21) target = $region8
  $region5: #{dense_ddcb_forward.1} parent=0 // loop_body
    %s25 = ssub.s32 %s20, 1
    %s26 = ssub.s32 %s20, 2
    %s27 = sadd.s32 %s20, 1
    %s28 = ssub.s32 %s20, %s27
    %p29 = scmp.eq.s32.totalorder %s28, 0
    %s31 = sadd.s32 %s30, 1
    %s32 = scalar_select %p29, %s30, %s31
    %p35 = pneg %p29
    %p36 = scmp.eq.s32.totalorder %s20, 1
    %p37 = por %p35, %p36
    %p38 = scmp.ne.s32.totalorder %s30, %s33
    %p39 = scmp.eq.s32.totalorder %s20, 0
    %p40 = por %p38, %p39
    %p41 = scmp.ne.s32.totalorder %s30, %s33
    %p42 = scmp.eq.s32.totalorder %s25, 1
    %p43 = por %p41, %p42
    %p44 = scmp.ne.s32.totalorder %s33, %s34
    %p45 = scmp.eq.s32.totalorder %s25, 0
    %p46 = por %p44, %p45
    %p47 = scmp.ne.s32.totalorder %s33, %s34
    %p48 = scmp.eq.s32.totalorder %s26, 1
    %p49 = por %p47, %p48
    %p51 = scmp.ne.s32.totalorder %s34, %s50
    %p52 = scmp.eq.s32.totalorder %s26, 0
    %p53 = por %p51, %p52
    %s55 = sadd.s32 %s54, 1
    %p58 = scmp.eq.s32.totalorder %s20, 1
    %p59 = scmp.ne.s32.totalorder %s54, %s56
    %p60 = scmp.eq.s32.totalorder %s20, 0
    %p61 = por %p59, %p60
    %p62 = scmp.ne.s32.totalorder %s54, %s56
    %p63 = scmp.eq.s32.totalorder %s25, 1
    %p64 = por %p62, %p63
    %p65 = scmp.ne.s32.totalorder %s56, %s57
    %p66 = scmp.eq.s32.totalorder %s25, 0
    %p67 = por %p65, %p66
    %p68 = scmp.ne.s32.totalorder %s56, %s57
    %p69 = scmp.eq.s32.totalorder %s26, 1
    %p70 = por %p68, %p69
    %p72 = scmp.ne.s32.totalorder %s57, %s71
    %p73 = scmp.eq.s32.totalorder %s26, 0
    %p74 = por %p72, %p73
    %s76 = sadd.s32 %s75, 1
    %p79 = scmp.eq.s32.totalorder %s20, 1
    %p80 = scmp.ne.s32.totalorder %s75, %s77
    %p81 = scmp.eq.s32.totalorder %s20, 0
    %p82 = por %p80, %p81
    %p83 = scmp.ne.s32.totalorder %s75, %s77
    %p84 = scmp.eq.s32.totalorder %s25, 1
    %p85 = por %p83, %p84
    %p86 = scmp.ne.s32.totalorder %s77, %s78
    %p87 = scmp.eq.s32.totalorder %s25, 0
    %p88 = por %p86, %p87
    %p89 = scmp.ne.s32.totalorder %s77, %s78
    %p90 = scmp.eq.s32.totalorder %s26, 1
    %p91 = por %p89, %p90
    %p93 = scmp.ne.s32.totalorder %s78, %s92
    %p94 = scmp.eq.s32.totalorder %s26, 0
    %p95 = por %p93, %p94
    %s97 = sadd.s32 %s96, 1
    %p100 = scmp.eq.s32.totalorder %s20, 1
    %p101 = scmp.ne.s32.totalorder %s96, %s98
    %p102 = scmp.eq.s32.totalorder %s20, 0
    %p103 = por %p101, %p102
    %p104 = scmp.ne.s32.totalorder %s96, %s98
    %p105 = scmp.eq.s32.totalorder %s25, 1
    %p106 = por %p104, %p105
    %p107 = scmp.ne.s32.totalorder %s98, %s99
    %p108 = scmp.eq.s32.totalorder %s25, 0
    %p109 = por %p107, %p108
    %p110 = scmp.ne.s32.totalorder %s98, %s99
    %p111 = scmp.eq.s32.totalorder %s26, 1
    %p112 = por %p110, %p111
    %p114 = scmp.ne.s32.totalorder %s99, %s113
    %p115 = scmp.eq.s32.totalorder %s26, 0
    %p116 = por %p114, %p115
    %s118 = sadd.s32 %s117, 1
    %p121 = scmp.eq.s32.totalorder %s20, 1
    %p122 = scmp.ne.s32.totalorder %s117, %s119
    %p123 = scmp.eq.s32.totalorder %s20, 0
    %p124 = por %p122, %p123
    %p125 = scmp.ne.s32.totalorder %s117, %s119
    %p126 = scmp.eq.s32.totalorder %s25, 1
    %p127 = por %p125, %p126
    %p128 = scmp.ne.s32.totalorder %s119, %s120
    %p129 = scmp.eq.s32.totalorder %s25, 0
    %p130 = por %p128, %p129
    %p131 = scmp.ne.s32.totalorder %s119, %s120
    %p132 = scmp.eq.s32.totalorder %s26, 1
    %p133 = por %p131, %p132
    %p135 = scmp.ne.s32.totalorder %s120, %s134
    %p136 = scmp.eq.s32.totalorder %s26, 0
    %p137 = por %p135, %p136
    %s139 = sadd.s32 %s138, 1
    %p142 = scmp.eq.s32.totalorder %s20, 1
    %p143 = scmp.ne.s32.totalorder %s138, %s140
    %p144 = scmp.eq.s32.totalorder %s20, 0
    %p145 = por %p143, %p144
    %p146 = scmp.ne.s32.totalorder %s138, %s140
    %p147 = scmp.eq.s32.totalorder %s25, 1
    %p148 = por %p146, %p147
    %p149 = scmp.ne.s32.totalorder %s140, %s141
    %p150 = scmp.eq.s32.totalorder %s25, 0
    %p151 = por %p149, %p150
    %p152 = scmp.ne.s32.totalorder %s140, %s141
    %p153 = scmp.eq.s32.totalorder %s26, 1
    %p154 = por %p152, %p153
    %p156 = scmp.ne.s32.totalorder %s141, %s155
    %p157 = scmp.eq.s32.totalorder %s26, 0
    %p158 = por %p156, %p157
    %s160 = sadd.s32 %s159, 1
    %p163 = scmp.eq.s32.totalorder %s20, 1
    %p164 = scmp.ne.s32.totalorder %s159, %s161
    %p165 = scmp.eq.s32.totalorder %s20, 0
    %p166 = por %p164, %p165
    %p167 = scmp.ne.s32.totalorder %s159, %s161
    %p168 = scmp.eq.s32.totalorder %s25, 1
    %p169 = por %p167, %p168
    %p170 = scmp.ne.s32.totalorder %s161, %s162
    %p171 = scmp.eq.s32.totalorder %s25, 0
    %p172 = por %p170, %p171
    %p173 = scmp.ne.s32.totalorder %s161, %s162
    %p174 = scmp.eq.s32.totalorder %s26, 1
    %p175 = por %p173, %p174
    %p177 = scmp.ne.s32.totalorder %s162, %s176
    %p178 = scmp.eq.s32.totalorder %s26, 0
    %p179 = por %p177, %p178
    %s181 = sadd.s32 %s180, 1
    %p184 = scmp.eq.s32.totalorder %s20, 1
    %p185 = scmp.ne.s32.totalorder %s180, %s182
    %p186 = scmp.eq.s32.totalorder %s20, 0
    %p187 = por %p185, %p186
    %p188 = scmp.ne.s32.totalorder %s180, %s182
    %p189 = scmp.eq.s32.totalorder %s25, 1
    %p190 = por %p188, %p189
    %p191 = scmp.ne.s32.totalorder %s182, %s183
    %p192 = scmp.eq.s32.totalorder %s25, 0
    %p193 = por %p191, %p192
    %p194 = scmp.ne.s32.totalorder %s182, %s183
    %p195 = scmp.eq.s32.totalorder %s26, 1
    %p196 = por %p194, %p195
    %p198 = scmp.ne.s32.totalorder %s183, %s197
    %p199 = scmp.eq.s32.totalorder %s26, 0
    %p200 = por %p198, %p199
    %s202 = sadd.s32 %s201, 1
    %p205 = scmp.eq.s32.totalorder %s20, 1
    %p206 = scmp.ne.s32.totalorder %s201, %s203
    %p207 = scmp.eq.s32.totalorder %s20, 0
    %p208 = por %p206, %p207
    %p209 = scmp.ne.s32.totalorder %s201, %s203
    %p210 = scmp.eq.s32.totalorder %s25, 1
    %p211 = por %p209, %p210
    %p212 = scmp.ne.s32.totalorder %s203, %s204
    %p213 = scmp.eq.s32.totalorder %s25, 0
    %p214 = por %p212, %p213
    %p215 = scmp.ne.s32.totalorder %s203, %s204
    %p216 = scmp.eq.s32.totalorder %s26, 1
    %p217 = por %p215, %p216
    %p219 = scmp.ne.s32.totalorder %s204, %s218
    %p220 = scmp.eq.s32.totalorder %s26, 0
    %p221 = por %p219, %p220
    %s223 = sadd.s32 %s222, 1
    %p226 = scmp.eq.s32.totalorder %s20, 1
    %p227 = scmp.ne.s32.totalorder %s222, %s224
    %p228 = scmp.eq.s32.totalorder %s20, 0
    %p229 = por %p227, %p228
    %p230 = scmp.ne.s32.totalorder %s222, %s224
    %p231 = scmp.eq.s32.totalorder %s25, 1
    %p232 = por %p230, %p231
    %p233 = scmp.ne.s32.totalorder %s224, %s225
    %p234 = scmp.eq.s32.totalorder %s25, 0
    %p235 = por %p233, %p234
    %p236 = scmp.ne.s32.totalorder %s224, %s225
    %p237 = scmp.eq.s32.totalorder %s26, 1
    %p238 = por %p236, %p237
    %p240 = scmp.ne.s32.totalorder %s225, %s239
    %p241 = scmp.eq.s32.totalorder %s26, 0
    %p242 = por %p240, %p241
    %s244 = sadd.s32 %s243, 1
    %p247 = scmp.eq.s32.totalorder %s20, 1
    %p248 = scmp.ne.s32.totalorder %s243, %s245
    %p249 = scmp.eq.s32.totalorder %s20, 0
    %p250 = por %p248, %p249
    %p251 = scmp.ne.s32.totalorder %s243, %s245
    %p252 = scmp.eq.s32.totalorder %s25, 1
    %p253 = por %p251, %p252
    %p254 = scmp.ne.s32.totalorder %s245, %s246
    %p255 = scmp.eq.s32.totalorder %s25, 0
    %p256 = por %p254, %p255
    %p257 = scmp.ne.s32.totalorder %s245, %s246
    %p258 = scmp.eq.s32.totalorder %s26, 1
    %p259 = por %p257, %p258
    %p261 = scmp.ne.s32.totalorder %s246, %s260
    %p262 = scmp.eq.s32.totalorder %s26, 0
    %p263 = por %p261, %p262
    %s265 = sadd.s32 %s264, 1
    %p268 = scmp.eq.s32.totalorder %s20, 1
    %p269 = scmp.ne.s32.totalorder %s264, %s266
    %p270 = scmp.eq.s32.totalorder %s20, 0
    %p271 = por %p269, %p270
    %p272 = scmp.ne.s32.totalorder %s264, %s266
    %p273 = scmp.eq.s32.totalorder %s25, 1
    %p274 = por %p272, %p273
    %p275 = scmp.ne.s32.totalorder %s266, %s267
    %p276 = scmp.eq.s32.totalorder %s25, 0
    %p277 = por %p275, %p276
    %p278 = scmp.ne.s32.totalorder %s266, %s267
    %p279 = scmp.eq.s32.totalorder %s26, 1
    %p280 = por %p278, %p279
    %p282 = scmp.ne.s32.totalorder %s267, %s281
    %p283 = scmp.eq.s32.totalorder %s26, 0
    %p284 = por %p282, %p283
    %s286 = sadd.s32 %s285, 1
    %p289 = scmp.eq.s32.totalorder %s20, 1
    %p290 = scmp.ne.s32.totalorder %s285, %s287
    %p291 = scmp.eq.s32.totalorder %s20, 0
    %p292 = por %p290, %p291
    %p293 = scmp.ne.s32.totalorder %s285, %s287
    %p294 = scmp.eq.s32.totalorder %s25, 1
    %p295 = por %p293, %p294
    %p296 = scmp.ne.s32.totalorder %s287, %s288
    %p297 = scmp.eq.s32.totalorder %s25, 0
    %p298 = por %p296, %p297
    %p299 = scmp.ne.s32.totalorder %s287, %s288
    %p300 = scmp.eq.s32.totalorder %s26, 1
    %p301 = por %p299, %p300
    %p303 = scmp.ne.s32.totalorder %s288, %s302
    %p304 = scmp.eq.s32.totalorder %s26, 0
    %p305 = por %p303, %p304
    %s307 = sadd.s32 %s306, 1
    %p310 = scmp.eq.s32.totalorder %s20, 1
    %p311 = scmp.ne.s32.totalorder %s306, %s308
    %p312 = scmp.eq.s32.totalorder %s20, 0
    %p313 = por %p311, %p312
    %p314 = scmp.ne.s32.totalorder %s306, %s308
    %p315 = scmp.eq.s32.totalorder %s25, 1
    %p316 = por %p314, %p315
    %p317 = scmp.ne.s32.totalorder %s308, %s309
    %p318 = scmp.eq.s32.totalorder %s25, 0
    %p319 = por %p317, %p318
    %p320 = scmp.ne.s32.totalorder %s308, %s309
    %p321 = scmp.eq.s32.totalorder %s26, 1
    %p322 = por %p320, %p321
    %p324 = scmp.ne.s32.totalorder %s309, %s323
    %p325 = scmp.eq.s32.totalorder %s26, 0
    %p326 = por %p324, %p325
    %s327 = ssub.s32 %s20, %s27
    %p328 = scmp.eq.s32.totalorder %s327, 0
    %s330 = sadd.s32 %s329, 1
    %s331 = scalar_select %p328, %s329, %s330
    %p334 = pneg %p328
    %p335 = scmp.eq.s32.totalorder %s20, 1
    %p336 = por %p334, %p335
    %p337 = scmp.ne.s32.totalorder %s329, %s332
    %p338 = scmp.eq.s32.totalorder %s20, 0
    %p339 = por %p337, %p338
    %p340 = scmp.ne.s32.totalorder %s329, %s332
    %p341 = scmp.eq.s32.totalorder %s25, 1
    %p342 = por %p340, %p341
    %p343 = scmp.ne.s32.totalorder %s332, %s333
    %p344 = scmp.eq.s32.totalorder %s25, 0
    %p345 = por %p343, %p344
    %p346 = scmp.ne.s32.totalorder %s332, %s333
    %p347 = scmp.eq.s32.totalorder %s26, 1
    %p348 = por %p346, %p347
    %p350 = scmp.ne.s32.totalorder %s333, %s349
    %p351 = scmp.eq.s32.totalorder %s26, 0
    %p352 = por %p350, %p351
    %p353 = scmp.le.s32.totalorder 1, %s20
    %p354 = scmp.lt.s32.totalorder %s20, 3
    %p355 = pnand %p353, %p354
    %p356 = pneg %p355
    // Predicated region
    $region9: #{dense_ddcb_forward.1} parent=5 // pred_check
      _
    $region10: #{dense_ddcb_forward.1} parent=5 // pred_check_branch
      %358 = sbr.rel (%p355) target = $region12
    $region11: #{dense_ddcb_forward.1} parent=5 // pred_region
      %s359 = ssub.s32 %s20, 1
      // Predicated region
      $region13: #{dense_ddcb_forward.1} parent=11 // pred_check
        %p360 = pneg %p67
      $region14: #{dense_ddcb_forward.1} parent=11 // pred_check_branch
        %362 = sbr.rel (%p360) target = $region16
      $region15: #{dense_ddcb_forward.1} parent=11 // pred_region
        _
      $region16: #{dense_ddcb_forward.1} parent=11 // pred_fallthru
        _
      // Predicated region
      $region17: #{dense_ddcb_forward.1} parent=11 // pred_check
        %p363 = pneg %p88
      $region18: #{dense_ddcb_forward.1} parent=11 // pred_check_branch
        %365 = sbr.rel (%p363) target = $region20
      $region19: #{dense_ddcb_forward.1} parent=11 // pred_region
        _
      $region20: #{dense_ddcb_forward.1} parent=11 // pred_fallthru
        _
      // Predicated region
      $region21: #{dense_ddcb_forward.1} parent=11 // pred_check
        %p366 = pneg %p109
      $region22: #{dense_ddcb_forward.1} parent=11 // pred_check_branch
        %368 = sbr.rel (%p366) target = $region24
      $region23: #{dense_ddcb_forward.1} parent=11 // pred_region
        _
      $region24: #{dense_ddcb_forward.1} parent=11 // pred_fallthru
        _
      // Predicated region
      $region25: #{dense_ddcb_forward.1} parent=11 // pred_check
        %p369 = pneg %p130
      $region26: #{dense_ddcb_forward.1} parent=11 // pred_check_branch
        %371 = sbr.rel (%p369) target = $region28
      $region27: #{dense_ddcb_forward.1} parent=11 // pred_region
        _
      $region28: #{dense_ddcb_forward.1} parent=11 // pred_fallthru
        _
      // Predicated region
      $region29: #{dense_ddcb_forward.1} parent=11 // pred_check
        %p372 = pneg %p151
      $region30: #{dense_ddcb_forward.1} parent=11 // pred_check_branch
        %374 = sbr.rel (%p372) target = $region32
      $region31: #{dense_ddcb_forward.1} parent=11 // pred_region
        _
      $region32: #{dense_ddcb_forward.1} parent=11 // pred_fallthru
        _
      // Predicated region
      $region33: #{dense_ddcb_forward.1} parent=11 // pred_check
        %p375 = pneg %p172
      $region34: #{dense_ddcb_forward.1} parent=11 // pred_check_branch
        %377 = sbr.rel (%p375) target = $region36
      $region35: #{dense_ddcb_forward.1} parent=11 // pred_region
        _
      $region36: #{dense_ddcb_forward.1} parent=11 // pred_fallthru
        _
      // Predicated region
      $region37: #{dense_ddcb_forward.1} parent=11 // pred_check
        %p378 = pneg %p193
      $region38: #{dense_ddcb_forward.1} parent=11 // pred_check_branch
        %380 = sbr.rel (%p378) target = $region40
      $region39: #{dense_ddcb_forward.1} parent=11 // pred_region
        _
      $region40: #{dense_ddcb_forward.1} parent=11 // pred_fallthru
        _
      // Predicated region
      $region41: #{dense_ddcb_forward.1} parent=11 // pred_check
        %p381 = pneg %p214
      $region42: #{dense_ddcb_forward.1} parent=11 // pred_check_branch
        %383 = sbr.rel (%p381) target = $region44
      $region43: #{dense_ddcb_forward.1} parent=11 // pred_region
        _
      $region44: #{dense_ddcb_forward.1} parent=11 // pred_fallthru
        _
      // Predicated region
      $region45: #{dense_ddcb_forward.1} parent=11 // pred_check
        %p384 = pneg %p235
      $region46: #{dense_ddcb_forward.1} parent=11 // pred_check_branch
        %386 = sbr.rel (%p384) target = $region48
      $region47: #{dense_ddcb_forward.1} parent=11 // pred_region
        _
      $region48: #{dense_ddcb_forward.1} parent=11 // pred_fallthru
        _
      // Predicated region
      $region49: #{dense_ddcb_forward.1} parent=11 // pred_check
        %p387 = pneg %p256
      $region50: #{dense_ddcb_forward.1} parent=11 // pred_check_branch
        %389 = sbr.rel (%p387) target = $region52
      $region51: #{dense_ddcb_forward.1} parent=11 // pred_region
        _
      $region52: #{dense_ddcb_forward.1} parent=11 // pred_fallthru
        _
      // Predicated region
      $region53: #{dense_ddcb_forward.1} parent=11 // pred_check
        %p390 = pneg %p277
      $region54: #{dense_ddcb_forward.1} parent=11 // pred_check_branch
        %392 = sbr.rel (%p390) target = $region56
      $region55: #{dense_ddcb_forward.1} parent=11 // pred_region
        _
      $region56: #{dense_ddcb_forward.1} parent=11 // pred_fallthru
        _
      // Predicated region
      $region57: #{dense_ddcb_forward.1} parent=11 // pred_check
        %p393 = pneg %p298
      $region58: #{dense_ddcb_forward.1} parent=11 // pred_check_branch
        %395 = sbr.rel (%p393) target = $region60
      $region59: #{dense_ddcb_forward.1} parent=11 // pred_region
        _
      $region60: #{dense_ddcb_forward.1} parent=11 // pred_fallthru
        _
      // Predicated region
      $region61: #{dense_ddcb_forward.1} parent=11 // pred_check
        %p396 = pneg %p319
      $region62: #{dense_ddcb_forward.1} parent=11 // pred_check_branch
        %398 = sbr.rel (%p396) target = $region64
      $region63: #{dense_ddcb_forward.1} parent=11 // pred_region
        _
      $region64: #{dense_ddcb_forward.1} parent=11 // pred_fallthru
        _
    $region12: #{dense_ddcb_forward.1} parent=5 // pred_fallthru
      _
    %p399 = scmp.lt.s32.totalorder %s20, 2
    // Predicated region
    $region65: #{dense_ddcb_forward.1} parent=5 // pred_check
      %p400 = pneg %p399
    $region66: #{dense_ddcb_forward.1} parent=5 // pred_check_branch
      %402 = sbr.rel (%p400) target = $region68
    $region67: #{dense_ddcb_forward.1} parent=5 // pred_region
      // Predicated region
      $region69: #{dense_ddcb_forward.1} parent=67 // pred_check
        %p403 = pneg %p40
      $region70: #{dense_ddcb_forward.1} parent=67 // pred_check_branch
        %405 = sbr.rel (%p403) target = $region72
      $region71: #{dense_ddcb_forward.1} parent=67 // pred_region
        %p406 = scmp.lt.s32.totalorder %s20, 1
        %s407 = scalar_select %p406, %s20, 1
        %s408 = smul.addr %s407, 2
        %s409 = smul.addr %s408, 8
        %s410 = scalar_lea.vmem %s0, %s409
      $region72: #{dense_ddcb_forward.1} parent=67 // pred_fallthru
        _
    $region68: #{dense_ddcb_forward.1} parent=5 // pred_fallthru
      _
    %p411 = scmp.le.s32.totalorder 1, %s20
    %p412 = scmp.lt.s32.totalorder %s20, 3
    %p413 = pnand %p411, %p412
    %p414 = pneg %p413
    // Predicated region
    $region73: #{dense_ddcb_forward.1} parent=5 // pred_check
      _
    $region74: #{dense_ddcb_forward.1} parent=5 // pred_check_branch
      %416 = sbr.rel (%p413) target = $region76
    $region75: #{dense_ddcb_forward.1} parent=5 // pred_region
      %s417 = ssub.s32 %s20, 1
      %p418 = scmp.lt.s32.totalorder %s25, 1
      %s419 = scalar_select %p418, %s25, 1
      %s420 = smul.addr %s419, 2
      %s421 = smul.addr %s420, 8
      %s422 = scalar_lea.vmem %s0, %s421
      %p423 = pneg %p46
      %p424 = pneg %p43
      %p425 = pneg %p67
      %p426 = pneg %p64
      %p427 = pneg %p88
      %p428 = pneg %p85
      %p429 = pneg %p109
      %p430 = pneg %p106
      %p431 = pneg %p130
      %p432 = pneg %p127
      %p433 = pneg %p151
      %p434 = pneg %p148
      %p435 = pneg %p172
      %p436 = pneg %p169
      %p437 = pneg %p193
      %p438 = pneg %p190
      %p439 = pneg %p214
      %p440 = pneg %p211
      %p441 = pneg %p235
      %p442 = pneg %p232
      %p443 = pneg %p256
      %p444 = pneg %p253
      %p445 = pneg %p277
      %p446 = pneg %p274
      %p447 = pneg %p298
      %p448 = pneg %p295
      %p449 = pneg %p319
      %p450 = pneg %p316
      %p451 = pneg %p345
      %p452 = pneg %p342
      %p453 = scmp.lt.s32.totalorder %s25, 1
      %s454 = scalar_select %p453, %s25, 1
      %s455 = smul.addr %s454, 4
      %s456 = smul.addr %s455, 8
      %s457 = scalar_lea.vmem %s14, %s456
      %p458 = scmp.lt.s32.totalorder %s25, 1
      %s459 = scalar_select %p458, %s25, 1
      %s460 = smul.addr %s459, 2
      %s461 = smul.addr %s460, 8
      %s462 = scalar_lea.vmem %s0, %s461
      %p463 = scmp.lt.s32.totalorder %s25, 1
      %s464 = scalar_select %p463, %s25, 1
      %s465 = smul.addr %s464, 4
      %s466 = smul.addr %s465, 8
      %s467 = scalar_lea.vmem %s14, %s466
      %468 = vst [vmem:[#allocation3] sm:$0xff] 0.0
      %469 = vst [vmem:[#allocation3 + $0x8] sm:$0xff] 0.0
      %470 = vst [vmem:[#allocation3 + $0x10] sm:$0xff] 0.0
      %471 = vst [vmem:[#allocation3 + $0x18] sm:$0xff] 0.0
      %472 = vst [vmem:[#allocation3 + $0x20] sm:$0xff] 0.0
      %473 = vst [vmem:[#allocation3 + $0x28] sm:$0xff] 0.0
      %474 = vst [vmem:[#allocation3 + $0x30] sm:$0xff] 0.0
      %475 = vst [vmem:[#allocation3 + $0x38] sm:$0xff] 0.0
      %v476 = vld [vmem:[%s462] sm:$0xff]
      %v477 = vld [vmem:[%s462 + $0x8] sm:$0xff]
      %478 = vst [vmem:[#allocation2] sm:$0xff] %v476
      %479 = vst [vmem:[#allocation2 + $0x8] sm:$0xff] %v477
      %v480 = vld [vmem:[%s1] sm:$0x3]
      %v481 = vld [vmem:[#allocation2] sm:$0xff]
      %v482 = vld [vmem:[#allocation2 + $0x8] sm:$0xff]
      %v483 = vld [vmem:[%s2] sm:$0xff]
      %485 = vset.pattern.permute.xlu0 0
      %486 = vperm.xlu0 %485, %v483
      %v487 = vpop.permute.xlu0 %486
      %v489 = vmul.f32 %v481, %v487
      %v490 = vmul.f32 %v482, %v487
      %v491 = vld [vmem:[%s3] sm:$0xff]
      %493 = vset.pattern.permute.xlu0 0
      %494 = vperm.xlu0 %493, %v491
      %v495 = vpop.permute.xlu0 %494
      %v497 = vadd.f32 %v489, %v495
      %v498 = vadd.f32 %v490, %v495
      %v499 = vmax.f32 %v497, 0.0
      %v500 = vmax.f32 %v498, 0.0
      %501 = vst [vmem:[#allocation3 + $0x8] sm:$0xff] %v499
      %502 = vst [vmem:[#allocation3 + $0x10] sm:$0xff] %v500
      %v503 = vld [vmem:[#allocation3] sm:$0xff]
      %v504 = vld [vmem:[#allocation3 + $0x8] sm:$0xff]
      %v505 = vld [vmem:[#allocation3 + $0x10] sm:$0xff]
      %v506 = vadd.s32 %v480, 4294967295
      %vm507 = vcmp.ge.s32.totalorder %v506, 0
      %vm508 = vcmp.lt.s32.totalorder %v506, 16
      %vm509 = vmand %vm507, %vm508
      %v510 = vsel %vm509, 1, 0
      %v511 = vlaneseq
      %v512 = vshrl.u32 %v511, 7
      %v513 = vsub.s32 0, %v512
      %v514 = vrot.slane %v510, %v513
      %v515 = vlaneseq
      %v516 = vshrl.u32 %v515, 7
      %v517 = vsub.s32 1, %v516
      %v518 = vrot.slane %v510, %v517
      %vm519 = vcmp.eq.s32.totalorder %v514, 1
      %vm520 = vcmp.eq.s32.totalorder %v518, 1
      %524 = vrot.lane.b32.xlu0 %v503, 17
      %v525 = vpop.permute.xlu0 %524
      %526 = vrot.lane.b32.xlu0 %v504, 17
      %v527 = vpop.permute.xlu0 %526
      %528 = vrot.lane.b32.xlu0 %v505, 17
      %v529 = vpop.permute.xlu0 %528
      %vm530 = vcmask 138240
      %v531 = vsel %vm530, %v525, %v527
      %v532 = vsel %vm530, %v527, %v529
      %v535 = vsel %vm519, %v531, 0.0
      %v536 = vsel %vm520, %v532, 0.0
      %537 = vst [vmem:[#allocation4] sm:$0xff] %v535
      %538 = vst [vmem:[#allocation4 + $0x8] sm:$0xff] %v536
      %v539 = vld [vmem:[#allocation3] sm:$0xff]
      %v540 = vld [vmem:[#allocation3 + $0x8] sm:$0xff]
      %v541 = vld [vmem:[#allocation3 + $0x10] sm:$0xff]
      %545 = vrot.lane.b32.xlu0 %v539, 16
      %v546 = vpop.permute.xlu0 %545
      %547 = vrot.lane.b32.xlu0 %v540, 16
      %v548 = vpop.permute.xlu0 %547
      %549 = vrot.lane.b32.xlu0 %v541, 16
      %v550 = vpop.permute.xlu0 %549
      %vm551 = vcmask 130048
      %v552 = vsel %vm551, %v546, %v548
      %v553 = vsel %vm551, %v548, %v550
      %556 = vst [vmem:[#allocation4 + $0x10] sm:$0xff] %v552
      %557 = vst [vmem:[#allocation4 + $0x18] sm:$0xff] %v553
      %v558 = vld [vmem:[#allocation3] sm:$0xff]
      %v559 = vld [vmem:[#allocation3 + $0x8] sm:$0xff]
      %v560 = vld [vmem:[#allocation3 + $0x10] sm:$0xff]
      %v561 = vadd.s32 %v480, 1
      %vm562 = vcmp.ge.s32.totalorder %v561, 0
      %vm563 = vcmp.lt.s32.totalorder %v561, 16
      %vm564 = vmand %vm562, %vm563
      %v565 = vsel %vm564, 1, 0
      %v566 = vlaneseq
      %v567 = vshrl.u32 %v566, 7
      %v568 = vsub.s32 0, %v567
      %v569 = vrot.slane %v565, %v568
      %v570 = vlaneseq
      %v571 = vshrl.u32 %v570, 7
      %v572 = vsub.s32 1, %v571
      %v573 = vrot.slane %v565, %v572
      %vm574 = vcmp.eq.s32.totalorder %v569, 1
      %vm575 = vcmp.eq.s32.totalorder %v573, 1
      %579 = vrot.lane.b32.xlu0 %v558, 15
      %v580 = vpop.permute.xlu0 %579
      %581 = vrot.lane.b32.xlu0 %v559, 15
      %v582 = vpop.permute.xlu0 %581
      %583 = vrot.lane.b32.xlu0 %v560, 15
      %v584 = vpop.permute.xlu0 %583
      %vm585 = vcmask 121856
      %v586 = vsel %vm585, %v580, %v582
      %v587 = vsel %vm585, %v582, %v584
      %v590 = vsel %vm574, %v586, 0.0
      %v591 = vsel %vm575, %v587, 0.0
      %592 = vst [vmem:[#allocation4 + $0x20] sm:$0xff] %v590
      %593 = vst [vmem:[#allocation4 + $0x28] sm:$0xff] %v591
      %v594 = vld [vmem:[#allocation3] sm:$0xff]
      %v595 = vld [vmem:[#allocation3 + $0x8] sm:$0xff]
      %v596 = vld [vmem:[#allocation3 + $0x10] sm:$0xff]
      %600 = vrot.lane.b32.xlu0 %v594, 1
      %v601 = vpop.permute.xlu0 %600
      %602 = vrot.lane.b32.xlu0 %v595, 1
      %v603 = vpop.permute.xlu0 %602
      %604 = vrot.lane.b32.xlu0 %v596, 1
      %v605 = vpop.permute.xlu0 %604
      %vm606 = vcmask 7168
      %v607 = vsel %vm606, %v601, %v603
      %v608 = vsel %vm606, %v603, %v605
      %v611 = vsel %vm519, %v607, 0.0
      %v612 = vsel %vm520, %v608, 0.0
      %613 = vst [vmem:[#allocation4 + $0x30] sm:$0xff] %v611
      %614 = vst [vmem:[#allocation4 + $0x38] sm:$0xff] %v612
      %v615 = vld [vmem:[#allocation3 + $0x8] sm:$0xff]
      %v616 = vld [vmem:[#allocation3 + $0x10] sm:$0xff]
      %617 = vst [vmem:[#allocation4 + $0x40] sm:$0xff] %v615
      %618 = vst [vmem:[#allocation4 + $0x48] sm:$0xff] %v616
      %v619 = vld [vmem:[#allocation3 + $0x8] sm:$0xff]
      %v620 = vld [vmem:[#allocation3 + $0x10] sm:$0xff]
      %v621 = vld [vmem:[#allocation3 + $0x18] sm:$0xff]
      %625 = vrot.lane.b32.xlu0 %v619, 127
      %v626 = vpop.permute.xlu0 %625
      %627 = vrot.lane.b32.xlu0 %v620, 127
      %v628 = vpop.permute.xlu0 %627
      %629 = vrot.lane.b32.xlu0 %v621, 127
      %v630 = vpop.permute.xlu0 %629
      %vm631 = vcmask 1039360
      %v632 = vsel %vm631, %v626, %v628
      %v633 = vsel %vm631, %v628, %v630
      %v636 = vsel %vm574, %v632, 0.0
      %v637 = vsel %vm575, %v633, 0.0
      %638 = vst [vmem:[#allocation4 + $0x50] sm:$0xff] %v636
      %639 = vst [vmem:[#allocation4 + $0x58] sm:$0xff] %v637
      %v640 = vld [vmem:[#allocation3 + $0x8] sm:$0xff]
      %v641 = vld [vmem:[#allocation3 + $0x10] sm:$0xff]
      %v642 = vld [vmem:[#allocation3 + $0x18] sm:$0xff]
      %646 = vrot.lane.b32.xlu0 %v640, 113
      %v647 = vpop.permute.xlu0 %646
      %648 = vrot.lane.b32.xlu0 %v641, 113
      %v649 = vpop.permute.xlu0 %648
      %650 = vrot.lane.b32.xlu0 %v642, 113
      %v651 = vpop.permute.xlu0 %650
      %vm652 = vcmask 924672
      %v653 = vsel %vm652, %v647, %v649
      %v654 = vsel %vm652, %v649, %v651
      %v657 = vsel %vm519, %v653, 0.0
      %v658 = vsel %vm520, %v654, 0.0
      %659 = vst [vmem:[#allocation4 + $0x60] sm:$0xff] %v657
      %660 = vst [vmem:[#allocation4 + $0x68] sm:$0xff] %v658
      %v661 = vld [vmem:[#allocation3 + $0x8] sm:$0xff]
      %v662 = vld [vmem:[#allocation3 + $0x10] sm:$0xff]
      %v663 = vld [vmem:[#allocation3 + $0x18] sm:$0xff]
      %667 = vrot.lane.b32.xlu0 %v661, 112
      %v668 = vpop.permute.xlu0 %667
      %669 = vrot.lane.b32.xlu0 %v662, 112
      %v670 = vpop.permute.xlu0 %669
      %671 = vrot.lane.b32.xlu0 %v663, 112
      %v672 = vpop.permute.xlu0 %671
      %vm673 = vcmask 916480
      %v674 = vsel %vm673, %v668, %v670
      %v675 = vsel %vm673, %v670, %v672
      %678 = vst [vmem:[#allocation4 + $0x70] sm:$0xff] %v674
      %679 = vst [vmem:[#allocation4 + $0x78] sm:$0xff] %v675
      %v680 = vld [vmem:[#allocation3 + $0x8] sm:$0xff]
      %v681 = vld [vmem:[#allocation3 + $0x10] sm:$0xff]
      %v682 = vld [vmem:[#allocation3 + $0x18] sm:$0xff]
      %686 = vrot.lane.b32.xlu0 %v680, 111
      %v687 = vpop.permute.xlu0 %686
      %688 = vrot.lane.b32.xlu0 %v681, 111
      %v689 = vpop.permute.xlu0 %688
      %690 = vrot.lane.b32.xlu0 %v682, 111
      %v691 = vpop.permute.xlu0 %690
      %vm692 = vcmask 908288
      %v693 = vsel %vm692, %v687, %v689
      %v694 = vsel %vm692, %v689, %v691
      %v697 = vsel %vm574, %v693, 0.0
      %v698 = vsel %vm575, %v694, 0.0
      %699 = vst [vmem:[#allocation4 + $0x80] sm:$0xff] %v697
      %700 = vst [vmem:[#allocation4 + $0x88] sm:$0xff] %v698
      %v701 = vld [vmem:[%s4] sm:$0xf]
      %v702 = vld [vmem:[#allocation4] sm:$0xff]
      %v703 = vld [vmem:[#allocation4 + $0x8] sm:$0xff]
      %v704 = vld [vmem:[#allocation4 + $0x10] sm:$0xff]
      %v705 = vld [vmem:[#allocation4 + $0x18] sm:$0xff]
      %v706 = vld [vmem:[#allocation4 + $0x20] sm:$0xff]
      %v707 = vld [vmem:[#allocation4 + $0x28] sm:$0xff]
      %v708 = vld [vmem:[#allocation4 + $0x30] sm:$0xff]
      %v709 = vld [vmem:[#allocation4 + $0x38] sm:$0xff]
      %v710 = vld [vmem:[#allocation4 + $0x40] sm:$0xff]
      %v711 = vld [vmem:[#allocation4 + $0x48] sm:$0xff]
      %v712 = vld [vmem:[#allocation4 + $0x50] sm:$0xff]
      %v713 = vld [vmem:[#allocation4 + $0x58] sm:$0xff]
      %v714 = vld [vmem:[#allocation4 + $0x60] sm:$0xff]
      %v715 = vld [vmem:[#allocation4 + $0x68] sm:$0xff]
      %v716 = vld [vmem:[#allocation4 + $0x70] sm:$0xff]
      %v717 = vld [vmem:[#allocation4 + $0x78] sm:$0xff]
      %v718 = vld [vmem:[#allocation4 + $0x80] sm:$0xff]
      %v719 = vld [vmem:[#allocation4 + $0x88] sm:$0xff]
      %vm720 = vcmask 588800
      %v722 = vsel %vm720, %v701, 0
      %724 = vmatprep.subr.mxu0 0.0
      %725 = vmatpush1.msra.mxu0 0.0
      %726 = vmatprep.subr.mxu0 0.0
      %727 = vmatpush1.msra.mxu0 0.0
      %728 = vmatprep.subr.mxu0 0.0
      %729 = vmatpush1.msra.mxu0 0.0
      %730 = vmatprep.subr.mxu0 0.0
      %731 = vmatpush1.msra.mxu0 0.0
      %732 = vmatprep.subr.mxu0 0.0
      %733 = vmatpush1.msra.mxu0 0.0
      %734 = vmatprep.subr.mxu0 0.0
      %735 = vmatpush1.msra.mxu0 0.0
      %736 = vmatprep.subr.mxu0 0.0
      %737 = vmatpush1.msra.mxu0 0.0
      %738 = vmatprep.subr.mxu0 %v719
      %739 = vmatpush1.msra.mxu0 %v718
      %740 = vmatprep.subr.mxu0 %v717
      %741 = vmatpush1.msra.mxu0 %v716
      %742 = vmatprep.subr.mxu0 %v715
      %743 = vmatpush1.msra.mxu0 %v714
      %744 = vmatprep.subr.mxu0 %v713
      %745 = vmatpush1.msra.mxu0 %v712
      %746 = vmatprep.subr.mxu0 %v711
      %747 = vmatpush1.msra.mxu0 %v710
      %748 = vmatprep.subr.mxu0 %v709
      %749 = vmatpush1.msra.mxu0 %v708
      %750 = vmatprep.subr.mxu0 %v707
      %751 = vmatpush1.msra.mxu0 %v706
      %752 = vmatprep.subr.mxu0 %v705
      %753 = vmatpush1.msra.mxu0 %v704
      %754 = vmatprep.subr.mxu0 %v703
      %755 = vmatpush1.msra.mxu0 %v702
      %756 = vmatprep.subr.mxu0 0.0
      %757 = vmatpush2.msra.mxu0 0.0
      %758 = vmatprep.subr.mxu0 0.0
      %759 = vmatpush2.msra.mxu0 0.0
      %760 = vmatprep.subr.mxu0 0.0
      %761 = vmatpush2.msra.mxu0 0.0
      %762 = vmatprep.subr.mxu0 0.0
      %763 = vmatpush2.msra.mxu0 0.0
      %764 = vmatprep.subr.mxu0 0.0
      %765 = vmatpush2.msra.mxu0 0.0
      %766 = vmatprep.subr.mxu0 0.0
      %767 = vmatpush2.msra.mxu0 0.0
      %768 = vmatprep.subr.mxu0 0.0
      %769 = vmatpush2.msra.mxu0 0.0
      %770 = vmatprep.subr.mxu0 0.0
      %771 = vmatpush2.msra.mxu0 0.0
      %772 = vmatprep.subr.mxu0 0.0
      %773 = vmatpush2.msra.mxu0 0.0
      %774 = vmatprep.subr.mxu0 0.0
      %775 = vmatpush2.msra.mxu0 0.0
      %776 = vmatprep.subr.mxu0 0.0
      %777 = vmatpush2.msra.mxu0 0.0
      %778 = vmatprep.subr.mxu0 0.0
      %779 = vmatpush2.msra.mxu0 0.0
      %780 = vmatprep.subr.mxu0 0.0
      %781 = vmatpush2.msra.mxu0 0.0
      %782 = vmatprep.subr.mxu0 0.0
      %783 = vmatpush2.msra.mxu0 0.0
      %784 = vmatprep.subr.mxu0 0.0
      %785 = vmatpush2.msra.mxu0 0.0
      %786 = vmatprep.subr.mxu0 0.0
      %787 = vmatpush2.msra.mxu0 0.0
      %788 = vmatprep.mubr.f32.mxu0 0.0
      %789 = vmatmul.mubr.f32.gmra.mxu0 %v722
      %v790 = vpop.f32.mrf.mxu0
      %v791 = vadd.f32 0.0, %v790
      %v792 = vpop.f32.mrf.mxu0
      %v793 = vadd.f32 0.0, %v792
      %794 = vdwg.mxu0
      %795 = vst [vmem:[#allocation2 + $0x10] sm:$0xf] %v791
      %796 = vst [vmem:[#allocation2 + $0x18] sm:$0xf] %v793
      %v797 = vld [vmem:[#allocation2] sm:$0xff]
      %v798 = vld [vmem:[#allocation2 + $0x8] sm:$0xff]
      %v799 = vld [vmem:[#allocation2 + $0x10] sm:$0xf]
      %v800 = vld [vmem:[#allocation2 + $0x18] sm:$0xf]
      %v801 = vld [vmem:[%s5] sm:$0xff]
      %v802 = vld [vmem:[%s5 + $0x8] sm:$0xf]
      %804 = vset.pattern.permute.xlu0 0
      %805 = vperm.xlu0 %804, %v801
      %v806 = vpop.permute.xlu0 %805
      %809 = vset.pattern.permute.xlu0 0
      %810 = vperm.xlu0 %809, %v802
      %v811 = vpop.permute.xlu0 %810
      %v813 = vmul.f32 %v797, %v806
      %v814 = vmul.f32 %v798, %v806
      %v815 = vmul.f32 %v799, %v811
      %v816 = vmul.f32 %v800, %v811
      %v817 = vld [vmem:[%s6] sm:$0xff]
      %v818 = vld [vmem:[%s6 + $0x8] sm:$0xf]
      %820 = vset.pattern.permute.xlu0 0
      %821 = vperm.xlu0 %820, %v817
      %v822 = vpop.permute.xlu0 %821
      %825 = vset.pattern.permute.xlu0 0
      %826 = vperm.xlu0 %825, %v818
      %v827 = vpop.permute.xlu0 %826
      %v829 = vadd.f32 %v813, %v822
      %v830 = vadd.f32 %v814, %v822
      %v831 = vadd.f32 %v815, %v827
      %v832 = vadd.f32 %v816, %v827
      %v833 = vmax.f32 %v829, 0.0
      %v834 = vmax.f32 %v830, 0.0
      %v835 = vmax.f32 %v831, 0.0
      %v836 = vmax.f32 %v832, 0.0
      %837 = vst [vmem:[#allocation3 + $0x8] sm:$0xff] %v833
      %838 = vst [vmem:[#allocation3 + $0x10] sm:$0xff] %v834
      %839 = vst [vmem:[#allocation3 + $0x28] sm:$0xf] %v835
      %840 = vst [vmem:[#allocation3 + $0x30] sm:$0xf] %v836
      %v841 = vld [vmem:[#allocation3] sm:$0xff]
      %v842 = vld [vmem:[#allocation3 + $0x8] sm:$0xff]
      %v843 = vld [vmem:[#allocation3 + $0x10] sm:$0xff]
      %v844 = vld [vmem:[#allocation3 + $0x20] sm:$0xf]
      %v845 = vld [vmem:[#allocation3 + $0x28] sm:$0xf]
      %v846 = vld [vmem:[#allocation3 + $0x30] sm:$0xf]
      %v847 = vadd.s32 %v480, 4294967294
      %vm848 = vcmp.ge.s32.totalorder %v847, 0
      %vm849 = vcmp.lt.s32.totalorder %v847, 16
      %vm850 = vmand %vm848, %vm849
      %v851 = vsel %vm850, 1, 0
      %v852 = vlaneseq
      %v853 = vshrl.u32 %v852, 7
      %v854 = vsub.s32 0, %v853
      %v855 = vrot.slane %v851, %v854
      %v856 = vlaneseq
      %v857 = vshrl.u32 %v856, 7
      %v858 = vsub.s32 1, %v857
      %v859 = vrot.slane %v851, %v858
      %vm860 = vcmp.eq.s32.totalorder %v855, 1
      %vm861 = vcmp.eq.s32.totalorder %v859, 1
      %868 = vrot.lane.b32.xlu0 %v841, 34
      %v869 = vpop.permute.xlu0 %868
      %870 = vrot.lane.b32.xlu0 %v842, 34
      %v871 = vpop.permute.xlu0 %870
      %872 = vrot.lane.b32.xlu0 %v843, 34
      %v873 = vpop.permute.xlu0 %872
      %874 = vrot.lane.b32.xlu0 %v844, 34
      %v875 = vpop.permute.xlu0 %874
      %876 = vrot.lane.b32.xlu0 %v845, 34
      %v877 = vpop.permute.xlu0 %876
      %878 = vrot.lane.b32.xlu0 %v846, 34
      %v879 = vpop.permute.xlu0 %878
      %vm880 = vcmask 277504
      %v881 = vsel %vm880, %v869, %v871
      %v882 = vsel %vm880, %v871, %v873
      %v883 = vsel %vm880, %v875, %v877
      %v884 = vsel %vm880, %v877, %v879
      %v889 = vsel %vm860, %v881, 0.0
      %v890 = vsel %vm861, %v882, 0.0
      %v891 = vsel %vm860, %v883, 0.0
      %v892 = vsel %vm861, %v884, 0.0
      %893 = vst [vmem:[#allocation4] sm:$0xff] %v889
      %894 = vst [vmem:[#allocation4 + $0x8] sm:$0xff] %v890
      %895 = vst [vmem:[#allocation4 + $0x10] sm:$0xf] %v891
      %896 = vst [vmem:[#allocation4 + $0x18] sm:$0xf] %v892
      %v897 = vld [vmem:[#allocation3] sm:$0xff]
      %v898 = vld [vmem:[#allocation3 + $0x8] sm:$0xff]
      %v899 = vld [vmem:[#allocation3 + $0x10] sm:$0xff]
      %v900 = vld [vmem:[#allocation3 + $0x20] sm:$0xf]
      %v901 = vld [vmem:[#allocation3 + $0x28] sm:$0xf]
      %v902 = vld [vmem:[#allocation3 + $0x30] sm:$0xf]
      %vm909 = vcmask 1043456
      %v910 = vrot.slane %v897, 4
      %v911 = vrot.slane %v898, 4
      %v912 = vrot.slane %v899, 4
      %v913 = vrot.slane %v900, 4
      %v914 = vsel %vm909, %v910, %v913
      %v915 = vrot.slane %v901, 4
      %v916 = vsel %vm909, %v911, %v915
      %v917 = vrot.slane %v902, 4
      %v918 = vsel %vm909, %v912, %v917
      %919 = vrot.lane.b32.xlu0 %v910, 32
      %v920 = vpop.permute.xlu0 %919
      %921 = vrot.lane.b32.xlu0 %v911, 32
      %v922 = vpop.permute.xlu0 %921
      %923 = vrot.lane.b32.xlu0 %v912, 32
      %v924 = vpop.permute.xlu0 %923
      %925 = vrot.lane.b32.xlu0 %v914, 32
      %v926 = vpop.permute.xlu0 %925
      %927 = vrot.lane.b32.xlu0 %v916, 32
      %v928 = vpop.permute.xlu0 %927
      %929 = vrot.lane.b32.xlu0 %v918, 32
      %v930 = vpop.permute.xlu0 %929
      %vm931 = vcmask 261120
      %v932 = vsel %vm931, %v920, %v922
      %v933 = vsel %vm931, %v922, %v924
      %v934 = vsel %vm931, %v926, %v928
      %v935 = vsel %vm931, %v928, %v930
      %940 = vst [vmem:[#allocation4 + $0x10] sm:$0xf0] %v932
      %941 = vst [vmem:[#allocation4 + $0x18] sm:$0xf0] %v933
      %942 = vst [vmem:[#allocation4 + $0x20] sm:$0xff] %v934
      %943 = vst [vmem:[#allocation4 + $0x28] sm:$0xff] %v935
      %v944 = vld [vmem:[#allocation3] sm:$0xff]
      %v945 = vld [vmem:[#allocation3 + $0x8] sm:$0xff]
      %v946 = vld [vmem:[#allocation3 + $0x10] sm:$0xff]
      %v947 = vld [vmem:[#allocation3 + $0x20] sm:$0xf]
      %v948 = vld [vmem:[#allocation3 + $0x28] sm:$0xf]
      %v949 = vld [vmem:[#allocation3 + $0x30] sm:$0xf]
      %v950 = vadd.s32 %v480, 2
      %vm951 = vcmp.ge.s32.totalorder %v950, 0
      %vm952 = vcmp.lt.s32.totalorder %v950, 16
      %vm953 = vmand %vm951, %vm952
      %v954 = vsel %vm953, 1, 0
      %v955 = vlaneseq
      %v956 = vshrl.u32 %v955, 7
      %v957 = vsub.s32 0, %v956
      %v958 = vrot.slane %v954, %v957
      %v959 = vlaneseq
      %v960 = vshrl.u32 %v959, 7
      %v961 = vsub.s32 1, %v960
      %v962 = vrot.slane %v954, %v961
      %vm963 = vcmp.eq.s32.totalorder %v958, 1
      %vm964 = vcmp.eq.s32.totalorder %v962, 1
      %971 = vrot.lane.b32.xlu0 %v944, 30
      %v972 = vpop.permute.xlu0 %971
      %973 = vrot.lane.b32.xlu0 %v945, 30
      %v974 = vpop.permute.xlu0 %973
      %975 = vrot.lane.b32.xlu0 %v946, 30
      %v976 = vpop.permute.xlu0 %975
      %977 = vrot.lane.b32.xlu0 %v947, 30
      %v978 = vpop.permute.xlu0 %977
      %979 = vrot.lane.b32.xlu0 %v948, 30
      %v980 = vpop.permute.xlu0 %979
      %981 = vrot.lane.b32.xlu0 %v949, 30
      %v982 = vpop.permute.xlu0 %981
      %vm983 = vcmask 244736
      %v984 = vsel %vm983, %v972, %v974
      %v985 = vsel %vm983, %v974, %v976
      %v986 = vsel %vm983, %v978, %v980
      %v987 = vsel %vm983, %v980, %v982
      %v992 = vsel %vm963, %v984, 0.0
      %v993 = vsel %vm964, %v985, 0.0
      %v994 = vsel %vm963, %v986, 0.0
      %v995 = vsel %vm964, %v987, 0.0
      %996 = vst [vmem:[#allocation4 + $0x30] sm:$0xff] %v992
      %997 = vst [vmem:[#allocation4 + $0x38] sm:$0xff] %v993
      %998 = vst [vmem:[#allocation4 + $0x40] sm:$0xf] %v994
      %999 = vst [vmem:[#allocation4 + $0x48] sm:$0xf] %v995
      %v1000 = vld [vmem:[#allocation3] sm:$0xff]
      %v1001 = vld [vmem:[#allocation3 + $0x8] sm:$0xff]
      %v1002 = vld [vmem:[#allocation3 + $0x10] sm:$0xff]
      %v1003 = vld [vmem:[#allocation3 + $0x20] sm:$0xf]
      %v1004 = vld [vmem:[#allocation3 + $0x28] sm:$0xf]
      %v1005 = vld [vmem:[#allocation3 + $0x30] sm:$0xf]
      %1012 = vrot.lane.b32.xlu0 %v1000, 2
      %v1013 = vpop.permute.xlu0 %1012
      %1014 = vrot.lane.b32.xlu0 %v1001, 2
      %v1015 = vpop.permute.xlu0 %1014
      %1016 = vrot.lane.b32.xlu0 %v1002, 2
      %v1017 = vpop.permute.xlu0 %1016
      %1018 = vrot.lane.b32.xlu0 %v1003, 2
      %v1019 = vpop.permute.xlu0 %1018
      %1020 = vrot.lane.b32.xlu0 %v1004, 2
      %v1021 = vpop.permute.xlu0 %1020
      %1022 = vrot.lane.b32.xlu0 %v1005, 2
      %v1023 = vpop.permute.xlu0 %1022
      %vm1024 = vcmask 15360
      %v1025 = vsel %vm1024, %v1013, %v1015
      %v1026 = vsel %vm1024, %v1015, %v1017
      %v1027 = vsel %vm1024, %v1019, %v1021
      %v1028 = vsel %vm1024, %v1021, %v1023
      %v1033 = vsel %vm860, %v1025, 0.0
      %v1034 = vsel %vm861, %v1026, 0.0
      %v1035 = vsel %vm860, %v1027, 0.0
      %v1036 = vsel %vm861, %v1028, 0.0
      %v1041 = vrot.slane %v1033, 4
      %v1042 = vrot.slane %v1034, 4
      %v1043 = vrot.slane %v1035, 4
      %v1044 = vsel %vm909, %v1041, %v1043
      %v1045 = vrot.slane %v1036, 4
      %v1046 = vsel %vm909, %v1042, %v1045
      %1051 = vst [vmem:[#allocation4 + $0x40] sm:$0xf0] %v1041
      %1052 = vst [vmem:[#allocation4 + $0x48] sm:$0xf0] %v1042
      %1053 = vst [vmem:[#allocation4 + $0x50] sm:$0xff] %v1044
      %1054 = vst [vmem:[#allocation4 + $0x58] sm:$0xff] %v1046
      %v1055 = vld [vmem:[#allocation3 + $0x8] sm:$0xff]
      %v1056 = vld [vmem:[#allocation3 + $0x10] sm:$0xff]
      %v1057 = vld [vmem:[#allocation3 + $0x28] sm:$0xf]
      %v1058 = vld [vmem:[#allocation3 + $0x30] sm:$0xf]
      %1059 = vst [vmem:[#allocation4 + $0x60] sm:$0xff] %v1055
      %1060 = vst [vmem:[#allocation4 + $0x68] sm:$0xff] %v1056
      %1061 = vst [vmem:[#allocation4 + $0x70] sm:$0xf] %v1057
      %1062 = vst [vmem:[#allocation4 + $0x78] sm:$0xf] %v1058
      %v1063 = vld [vmem:[#allocation3 + $0x8] sm:$0xff]
      %v1064 = vld [vmem:[#allocation3 + $0x10] sm:$0xff]
      %v1065 = vld [vmem:[#allocation3 + $0x18] sm:$0xff]
      %v1066 = vld [vmem:[#allocation3 + $0x28] sm:$0xf]
      %v1067 = vld [vmem:[#allocation3 + $0x30] sm:$0xf]
      %v1068 = vld [vmem:[#allocation3 + $0x38] sm:$0xf]
      %1075 = vrot.lane.b32.xlu0 %v1063, 126
      %v1076 = vpop.permute.xlu0 %1075
      %1077 = vrot.lane.b32.xlu0 %v1064, 126
      %v1078 = vpop.permute.xlu0 %1077
      %1079 = vrot.lane.b32.xlu0 %v1065, 126
      %v1080 = vpop.permute.xlu0 %1079
      %1081 = vrot.lane.b32.xlu0 %v1066, 126
      %v1082 = vpop.permute.xlu0 %1081
      %1083 = vrot.lane.b32.xlu0 %v1067, 126
      %v1084 = vpop.permute.xlu0 %1083
      %1085 = vrot.lane.b32.xlu0 %v1068, 126
      %v1086 = vpop.permute.xlu0 %1085
      %vm1087 = vcmask 1031168
      %v1088 = vsel %vm1087, %v1076, %v1078
      %v1089 = vsel %vm1087, %v1078, %v1080
      %v1090 = vsel %vm1087, %v1082, %v1084
      %v1091 = vsel %vm1087, %v1084, %v1086
      %v1096 = vsel %vm963, %v1088, 0.0
      %v1097 = vsel %vm964, %v1089, 0.0
      %v1098 = vsel %vm963, %v1090, 0.0
      %v1099 = vsel %vm964, %v1091, 0.0
      %v1104 = vrot.slane %v1096, 4
      %v1105 = vrot.slane %v1097, 4
      %v1106 = vrot.slane %v1098, 4
      %v1107 = vsel %vm909, %v1104, %v1106
      %v1108 = vrot.slane %v1099, 4
      %v1109 = vsel %vm909, %v1105, %v1108
      %1114 = vst [vmem:[#allocation4 + $0x70] sm:$0xf0] %v1104
      %1115 = vst [vmem:[#allocation4 + $0x78] sm:$0xf0] %v1105
      %1116 = vst [vmem:[#allocation4 + $0x80] sm:$0xff] %v1107
      %1117 = vst [vmem:[#allocation4 + $0x88] sm:$0xff] %v1109
      %v1118 = vld [vmem:[#allocation3 + $0x8] sm:$0xff]
      %v1119 = vld [vmem:[#allocation3 + $0x10] sm:$0xff]
      %v1120 = vld [vmem:[#allocation3 + $0x18] sm:$0xff]
      %v1121 = vld [vmem:[#allocation3 + $0x28] sm:$0xf]
      %v1122 = vld [vmem:[#allocation3 + $0x30] sm:$0xf]
      %v1123 = vld [vmem:[#allocation3 + $0x38] sm:$0xf]
      %1130 = vrot.lane.b32.xlu0 %v1118, 98
      %v1131 = vpop.permute.xlu0 %1130
      %1132 = vrot.lane.b32.xlu0 %v1119, 98
      %v1133 = vpop.permute.xlu0 %1132
      %1134 = vrot.lane.b32.xlu0 %v1120, 98
      %v1135 = vpop.permute.xlu0 %1134
      %1136 = vrot.lane.b32.xlu0 %v1121, 98
      %v1137 = vpop.permute.xlu0 %1136
      %1138 = vrot.lane.b32.xlu0 %v1122, 98
      %v1139 = vpop.permute.xlu0 %1138
      %1140 = vrot.lane.b32.xlu0 %v1123, 98
      %v1141 = vpop.permute.xlu0 %1140
      %vm1142 = vcmask 801792
      %v1143 = vsel %vm1142, %v1131, %v1133
      %v1144 = vsel %vm1142, %v1133, %v1135
      %v1145 = vsel %vm1142, %v1137, %v1139
      %v1146 = vsel %vm1142, %v1139, %v1141
      %v1151 = vsel %vm860, %v1143, 0.0
      %v1152 = vsel %vm861, %v1144, 0.0
      %v1153 = vsel %vm860, %v1145, 0.0
      %v1154 = vsel %vm861, %v1146, 0.0
      %1155 = vst [vmem:[#allocation4 + $0x90] sm:$0xff] %v1151
      %1156 = vst [vmem:[#allocation4 + $0x98] sm:$0xff] %v1152
      %1157 = vst [vmem:[#allocation4 + $0xa0] sm:$0xf] %v1153
      %1158 = vst [vmem:[#allocation4 + $0xa8] sm:$0xf] %v1154
      %v1159 = vld [vmem:[#allocation3 + $0x8] sm:$0xff]
      %v1160 = vld [vmem:[#allocation3 + $0x10] sm:$0xff]
      %v1161 = vld [vmem:[#allocation3 + $0x18] sm:$0xff]
      %v1162 = vld [vmem:[#allocation3 + $0x28] sm:$0xf]
      %v1163 = vld [vmem:[#allocation3 + $0x30] sm:$0xf]
      %v1164 = vld [vmem:[#allocation3 + $0x38] sm:$0xf]
      %v1171 = vrot.slane %v1159, 4
      %v1172 = vrot.slane %v1160, 4
      %v1173 = vrot.slane %v1161, 4
      %v1174 = vrot.slane %v1162, 4
      %v1175 = vsel %vm909, %v1171, %v1174
      %v1176 = vrot.slane %v1163, 4
      %v1177 = vsel %vm909, %v1172, %v1176
      %v1178 = vrot.slane %v1164, 4
      %v1179 = vsel %vm909, %v1173, %v1178
      %1180 = vrot.lane.b32.xlu0 %v1171, 96
      %v1181 = vpop.permute.xlu0 %1180
      %1182 = vrot.lane.b32.xlu0 %v1172, 96
      %v1183 = vpop.permute.xlu0 %1182
      %1184 = vrot.lane.b32.xlu0 %v1173, 96
      %v1185 = vpop.permute.xlu0 %1184
      %1186 = vrot.lane.b32.xlu0 %v1175, 96
      %v1187 = vpop.permute.xlu0 %1186
      %1188 = vrot.lane.b32.xlu0 %v1177, 96
      %v1189 = vpop.permute.xlu0 %1188
      %1190 = vrot.lane.b32.xlu0 %v1179, 96
      %v1191 = vpop.permute.xlu0 %1190
      %vm1192 = vcmask 785408
      %v1193 = vsel %vm1192, %v1181, %v1183
      %v1194 = vsel %vm1192, %v1183, %v1185
      %v1195 = vsel %vm1192, %v1187, %v1189
      %v1196 = vsel %vm1192, %v1189, %v1191
      %1201 = vst [vmem:[#allocation4 + $0xa0] sm:$0xf0] %v1193
      %1202 = vst [vmem:[#allocation4 + $0xa8] sm:$0xf0] %v1194
      %1203 = vst [vmem:[#allocation4 + $0xb0] sm:$0xff] %v1195
      %1204 = vst [vmem:[#allocation4 + $0xb8] sm:$0xff] %v1196
      %v1205 = vld [vmem:[#allocation3 + $0x8] sm:$0xff]
      %v1206 = vld [vmem:[#allocation3 + $0x10] sm:$0xff]
      %v1207 = vld [vmem:[#allocation3 + $0x18] sm:$0xff]
      %v1208 = vld [vmem:[#allocation3 + $0x28] sm:$0xf]
      %v1209 = vld [vmem:[#allocation3 + $0x30] sm:$0xf]
      %v1210 = vld [vmem:[#allocation3 + $0x38] sm:$0xf]
      %1217 = vrot.lane.b32.xlu0 %v1205, 94
      %v1218 = vpop.permute.xlu0 %1217
      %1219 = vrot.lane.b32.xlu0 %v1206, 94
      %v1220 = vpop.permute.xlu0 %1219
      %1221 = vrot.lane.b32.xlu0 %v1207, 94
      %v1222 = vpop.permute.xlu0 %1221
      %1223 = vrot.lane.b32.xlu0 %v1208, 94
      %v1224 = vpop.permute.xlu0 %1223
      %1225 = vrot.lane.b32.xlu0 %v1209, 94
      %v1226 = vpop.permute.xlu0 %1225
      %1227 = vrot.lane.b32.xlu0 %v1210, 94
      %v1228 = vpop.permute.xlu0 %1227
      %vm1229 = vcmask 769024
      %v1230 = vsel %vm1229, %v1218, %v1220
      %v1231 = vsel %vm1229, %v1220, %v1222
      %v1232 = vsel %vm1229, %v1224, %v1226
      %v1233 = vsel %vm1229, %v1226, %v1228
      %v1238 = vsel %vm963, %v1230, 0.0
      %v1239 = vsel %vm964, %v1231, 0.0
      %v1240 = vsel %vm963, %v1232, 0.0
      %v1241 = vsel %vm964, %v1233, 0.0
      %1242 = vst [vmem:[#allocation4 + $0xc0] sm:$0xff] %v1238
      %1243 = vst [vmem:[#allocation4 + $0xc8] sm:$0xff] %v1239
      %1244 = vst [vmem:[#allocation4 + $0xd0] sm:$0xf] %v1240
      %1245 = vst [vmem:[#allocation4 + $0xd8] sm:$0xf] %v1241
      %v1246 = vld [vmem:[%s7] sm:$0xf]
      %v1247 = vld [vmem:[#allocation4] sm:$0xff]
      %v1248 = vld [vmem:[#allocation4 + $0x8] sm:$0xff]
      %v1249 = vld [vmem:[#allocation4 + $0x10] sm:$0xff]
      %v1250 = vld [vmem:[#allocation4 + $0x18] sm:$0xff]
      %v1251 = vld [vmem:[#allocation4 + $0x20] sm:$0xff]
      %v1252 = vld [vmem:[#allocation4 + $0x28] sm:$0xff]
      %v1253 = vld [vmem:[#allocation4 + $0x30] sm:$0xff]
      %v1254 = vld [vmem:[#allocation4 + $0x38] sm:$0xff]
      %v1255 = vld [vmem:[#allocation4 + $0x40] sm:$0xff]
      %v1256 = vld [vmem:[#allocation4 + $0x48] sm:$0xff]
      %v1257 = vld [vmem:[#allocation4 + $0x50] sm:$0xff]
      %v1258 = vld [vmem:[#allocation4 + $0x58] sm:$0xff]
      %v1259 = vld [vmem:[#allocation4 + $0x60] sm:$0xff]
      %v1260 = vld [vmem:[#allocation4 + $0x68] sm:$0xff]
      %v1261 = vld [vmem:[#allocation4 + $0x70] sm:$0xff]
      %v1262 = vld [vmem:[#allocation4 + $0x78] sm:$0xff]
      %v1263 = vld [vmem:[#allocation4 + $0x80] sm:$0xff]
      %v1264 = vld [vmem:[#allocation4 + $0x88] sm:$0xff]
      %v1265 = vld [vmem:[#allocation4 + $0x90] sm:$0xff]
      %v1266 = vld [vmem:[#allocation4 + $0x98] sm:$0xff]
      %v1267 = vld [vmem:[#allocation4 + $0xa0] sm:$0xff]
      %v1268 = vld [vmem:[#allocation4 + $0xa8] sm:$0xff]
      %v1269 = vld [vmem:[#allocation4 + $0xb0] sm:$0xff]
      %v1270 = vld [vmem:[#allocation4 + $0xb8] sm:$0xff]
      %v1271 = vld [vmem:[#allocation4 + $0xc0] sm:$0xff]
      %v1272 = vld [vmem:[#allocation4 + $0xc8] sm:$0xff]
      %v1273 = vld [vmem:[#allocation4 + $0xd0] sm:$0xf]
      %v1274 = vld [vmem:[#allocation4 + $0xd8] sm:$0xf]
      %vm1275 = vcmask 883712
      %v1277 = vsel %vm1275, %v1246, 0
      %v1280 = vsel %vm909, %v1273, 0
      %v1283 = vsel %vm909, %v1274, 0
      %1285 = vmatprep.subr.mxu0 0.0
      %1286 = vmatpush1.msra.mxu0 0.0
      %1287 = vmatprep.subr.mxu0 0.0
      %1288 = vmatpush1.msra.mxu0 0.0
      %1289 = vmatprep.subr.mxu0 %v1283
      %1290 = vmatpush1.msra.mxu0 %v1280
      %1291 = vmatprep.subr.mxu0 %v1272
      %1292 = vmatpush1.msra.mxu0 %v1271
      %1293 = vmatprep.subr.mxu0 %v1270
      %1294 = vmatpush1.msra.mxu0 %v1269
      %1295 = vmatprep.subr.mxu0 %v1268
      %1296 = vmatpush1.msra.mxu0 %v1267
      %1297 = vmatprep.subr.mxu0 %v1266
      %1298 = vmatpush1.msra.mxu0 %v1265
      %1299 = vmatprep.subr.mxu0 %v1264
      %1300 = vmatpush1.msra.mxu0 %v1263
      %1301 = vmatprep.subr.mxu0 %v1262
      %1302 = vmatpush1.msra.mxu0 %v1261
      %1303 = vmatprep.subr.mxu0 %v1260
      %1304 = vmatpush1.msra.mxu0 %v1259
      %1305 = vmatprep.subr.mxu0 %v1258
      %1306 = vmatpush1.msra.mxu0 %v1257
      %1307 = vmatprep.subr.mxu0 %v1256
      %1308 = vmatpush1.msra.mxu0 %v1255
      %1309 = vmatprep.subr.mxu0 %v1254
      %1310 = vmatpush1.msra.mxu0 %v1253
      %1311 = vmatprep.subr.mxu0 %v1252
      %1312 = vmatpush1.msra.mxu0 %v1251
      %1313 = vmatprep.subr.mxu0 %v1250
      %1314 = vmatpush1.msra.mxu0 %v1249
      %1315 = vmatprep.subr.mxu0 %v1248
      %1316 = vmatpush1.msra.mxu0 %v1247
      %1317 = vmatprep.subr.mxu0 0.0
      %1318 = vmatpush2.msra.mxu0 0.0
      %1319 = vmatprep.subr.mxu0 0.0
      %1320 = vmatpush2.msra.mxu0 0.0
      %1321 = vmatprep.subr.mxu0 0.0
      %1322 = vmatpush2.msra.mxu0 0.0
      %1323 = vmatprep.subr.mxu0 0.0
      %1324 = vmatpush2.msra.mxu0 0.0
      %1325 = vmatprep.subr.mxu0 0.0
      %1326 = vmatpush2.msra.mxu0 0.0
      %1327 = vmatprep.subr.mxu0 0.0
      %1328 = vmatpush2.msra.mxu0 0.0
      %1329 = vmatprep.subr.mxu0 0.0
      %1330 = vmatpush2.msra.mxu0 0.0
      %1331 = vmatprep.subr.mxu0 0.0
      %1332 = vmatpush2.msra.mxu0 0.0
      %1333 = vmatprep.subr.mxu0 0.0
      %1334 = vmatpush2.msra.mxu0 0.0
      %1335 = vmatprep.subr.mxu0 0.0
      %1336 = vmatpush2.msra.mxu0 0.0
      %1337 = vmatprep.subr.mxu0 0.0
      %1338 = vmatpush2.msra.mxu0 0.0
      %1339 = vmatprep.subr.mxu0 0.0
      %1340 = vmatpush2.msra.mxu0 0.0
      %1341 = vmatprep.subr.mxu0 0.0
      %1342 = vmatpush2.msra.mxu0 0.0
      %1343 = vmatprep.subr.mxu0 0.0
      %1344 = vmatpush2.msra.mxu0 0.0
      %1345 = vmatprep.subr.mxu0 0.0
      %1346 = vmatpush2.msra.mxu0 0.0
      %1347 = vmatprep.subr.mxu0 0.0
      %1348 = vmatpush2.msra.mxu0 0.0
      %1349 = vmatprep.mubr.f32.mxu0 0.0
      %1350 = vmatmul.mubr.f32.gmra.mxu0 %v1277
      %v1351 = vpop.f32.mrf.mxu0
      %v1352 = vadd.f32 0.0, %v1351
      %v1353 = vpop.f32.mrf.mxu0
      %v1354 = vadd.f32 0.0, %v1353
      %1355 = vdwg.mxu0
      %v1358 = vrot.slane %v1352, 4
      %v1359 = vrot.slane %v1354, 4
      %1362 = vst [vmem:[#allocation2 + $0x10] sm:$0xf0] %v1358
      %1363 = vst [vmem:[#allocation2 + $0x18] sm:$0xf0] %v1359
      %v1364 = vld [vmem:[#allocation2] sm:$0xff]
      %v1365 = vld [vmem:[#allocation2 + $0x8] sm:$0xff]
      %v1366 = vld [vmem:[#allocation2 + $0x10] sm:$0xff]
      %v1367 = vld [vmem:[#allocation2 + $0x18] sm:$0xff]
      %v1368 = vld [vmem:[%s8] sm:$0xff]
      %v1369 = vld [vmem:[%s8 + $0x8] sm:$0xff]
      %1371 = vset.pattern.permute.xlu0 0
      %1372 = vperm.xlu0 %1371, %v1368
      %v1373 = vpop.permute.xlu0 %1372
      %1376 = vset.pattern.permute.xlu0 0
      %1377 = vperm.xlu0 %1376, %v1369
      %v1378 = vpop.permute.xlu0 %1377
      %v1380 = vmul.f32 %v1364, %v1373
      %v1381 = vmul.f32 %v1365, %v1373
      %v1382 = vmul.f32 %v1366, %v1378
      %v1383 = vmul.f32 %v1367, %v1378
      %v1384 = vld [vmem:[%s9] sm:$0xff]
      %v1385 = vld [vmem:[%s9 + $0x8] sm:$0xff]
      %1387 = vset.pattern.permute.xlu0 0
      %1388 = vperm.xlu0 %1387, %v1384
      %v1389 = vpop.permute.xlu0 %1388
      %1392 = vset.pattern.permute.xlu0 0
      %1393 = vperm.xlu0 %1392, %v1385
      %v1394 = vpop.permute.xlu0 %1393
      %v1396 = vadd.f32 %v1380, %v1389
      %v1397 = vadd.f32 %v1381, %v1389
      %v1398 = vadd.f32 %v1382, %v1394
      %v1399 = vadd.f32 %v1383, %v1394
      %v1400 = vmax.f32 %v1396, 0.0
      %v1401 = vmax.f32 %v1397, 0.0
      %v1402 = vmax.f32 %v1398, 0.0
      %v1403 = vmax.f32 %v1399, 0.0
      %1404 = vst [vmem:[#allocation3 + $0x8] sm:$0xff] %v1400
      %1405 = vst [vmem:[#allocation3 + $0x10] sm:$0xff] %v1401
      %1406 = vst [vmem:[#allocation3 + $0x28] sm:$0xff] %v1402
      %1407 = vst [vmem:[#allocation3 + $0x30] sm:$0xff] %v1403
      %v1408 = vld [vmem:[#allocation3] sm:$0xff]
      %v1409 = vld [vmem:[#allocation3 + $0x8] sm:$0xff]
      %v1410 = vld [vmem:[#allocation3 + $0x10] sm:$0xff]
      %v1411 = vld [vmem:[#allocation3 + $0x20] sm:$0xff]
      %v1412 = vld [vmem:[#allocation3 + $0x28] sm:$0xff]
      %v1413 = vld [vmem:[#allocation3 + $0x30] sm:$0xff]
      %v1414 = vadd.s32 %v480, 4294967293
      %vm1415 = vcmp.ge.s32.totalorder %v1414, 0
      %vm1416 = vcmp.lt.s32.totalorder %v1414, 16
      %vm1417 = vmand %vm1415, %vm1416
      %v1418 = vsel %vm1417, 1, 0
      %v1419 = vlaneseq
      %v1420 = vshrl.u32 %v1419, 7
      %v1421 = vsub.s32 0, %v1420
      %v1422 = vrot.slane %v1418, %v1421
      %v1423 = vlaneseq
      %v1424 = vshrl.u32 %v1423, 7
      %v1425 = vsub.s32 1, %v1424
      %v1426 = vrot.slane %v1418, %v1425
      %vm1427 = vcmp.eq.s32.totalorder %v1422, 1
      %vm1428 = vcmp.eq.s32.totalorder %v1426, 1
      %1435 = vrot.lane.b32.xlu0 %v1408, 51
      %v1436 = vpop.permute.xlu0 %1435
      %1437 = vrot.lane.b32.xlu0 %v1409, 51
      %v1438 = vpop.permute.xlu0 %1437
      %1439 = vrot.lane.b32.xlu0 %v1410, 51
      %v1440 = vpop.permute.xlu0 %1439
      %1441 = vrot.lane.b32.xlu0 %v1411, 51
      %v1442 = vpop.permute.xlu0 %1441
      %1443 = vrot.lane.b32.xlu0 %v1412, 51
      %v1444 = vpop.permute.xlu0 %1443
      %1445 = vrot.lane.b32.xlu0 %v1413, 51
      %v1446 = vpop.permute.xlu0 %1445
      %vm1447 = vcmask 416768
      %v1448 = vsel %vm1447, %v1436, %v1438
      %v1449 = vsel %vm1447, %v1438, %v1440
      %v1450 = vsel %vm1447, %v1442, %v1444
      %v1451 = vsel %vm1447, %v1444, %v1446
      %v1456 = vsel %vm1427, %v1448, 0.0
      %v1457 = vsel %vm1428, %v1449, 0.0
      %v1458 = vsel %vm1427, %v1450, 0.0
      %v1459 = vsel %vm1428, %v1451, 0.0
      %1460 = vst [vmem:[#allocation4] sm:$0xff] %v1456
      %1461 = vst [vmem:[#allocation4 + $0x8] sm:$0xff] %v1457
      %1462 = vst [vmem:[#allocation4 + $0x10] sm:$0xff] %v1458
      %1463 = vst [vmem:[#allocation4 + $0x18] sm:$0xff] %v1459
      %v1464 = vld [vmem:[#allocation3] sm:$0xff]
      %v1465 = vld [vmem:[#allocation3 + $0x8] sm:$0xff]
      %v1466 = vld [vmem:[#allocation3 + $0x10] sm:$0xff]
      %v1467 = vld [vmem:[#allocation3 + $0x20] sm:$0xff]
      %v1468 = vld [vmem:[#allocation3 + $0x28] sm:$0xff]
      %v1469 = vld [vmem:[#allocation3 + $0x30] sm:$0xff]
      %1476 = vrot.lane.b32.xlu0 %v1464, 48
      %v1477 = vpop.permute.xlu0 %1476
      %1478 = vrot.lane.b32.xlu0 %v1465, 48
      %v1479 = vpop.permute.xlu0 %1478
      %1480 = vrot.lane.b32.xlu0 %v1466, 48
      %v1481 = vpop.permute.xlu0 %1480
      %1482 = vrot.lane.b32.xlu0 %v1467, 48
      %v1483 = vpop.permute.xlu0 %1482
      %1484 = vrot.lane.b32.xlu0 %v1468, 48
      %v1485 = vpop.permute.xlu0 %1484
      %1486 = vrot.lane.b32.xlu0 %v1469, 48
      %v1487 = vpop.permute.xlu0 %1486
      %vm1488 = vcmask 392192
      %v1489 = vsel %vm1488, %v1477, %v1479
      %v1490 = vsel %vm1488, %v1479, %v1481
      %v1491 = vsel %vm1488, %v1483, %v1485
      %v1492 = vsel %vm1488, %v1485, %v1487
      %1497 = vst [vmem:[#allocation4 + $0x20] sm:$0xff] %v1489
      %1498 = vst [vmem:[#allocation4 + $0x28] sm:$0xff] %v1490
      %1499 = vst [vmem:[#allocation4 + $0x30] sm:$0xff] %v1491
      %1500 = vst [vmem:[#allocation4 + $0x38] sm:$0xff] %v1492
      %v1501 = vld [vmem:[#allocation3] sm:$0xff]
      %v1502 = vld [vmem:[#allocation3 + $0x8] sm:$0xff]
      %v1503 = vld [vmem:[#allocation3 + $0x10] sm:$0xff]
      %v1504 = vld [vmem:[#allocation3 + $0x20] sm:$0xff]
      %v1505 = vld [vmem:[#allocation3 + $0x28] sm:$0xff]
      %v1506 = vld [vmem:[#allocation3 + $0x30] sm:$0xff]
      %v1507 = vadd.s32 %v480, 3
      %vm1508 = vcmp.ge.s32.totalorder %v1507, 0
      %vm1509 = vcmp.lt.s32.totalorder %v1507, 16
      %vm1510 = vmand %vm1508, %vm1509
      %v1511 = vsel %vm1510, 1, 0
      %v1512 = vlaneseq
      %v1513 = vshrl.u32 %v1512, 7
      %v1514 = vsub.s32 0, %v1513
      %v1515 = vrot.slane %v1511, %v1514
      %v1516 = vlaneseq
      %v1517 = vshrl.u32 %v1516, 7
      %v1518 = vsub.s32 1, %v1517
      %v1519 = vrot.slane %v1511, %v1518
      %vm1520 = vcmp.eq.s32.totalorder %v1515, 1
      %vm1521 = vcmp.eq.s32.totalorder %v1519, 1
      %1528 = vrot.lane.b32.xlu0 %v1501, 45
      %v1529 = vpop.permute.xlu0 %1528
      %1530 = vrot.lane.b32.xlu0 %v1502, 45
      %v1531 = vpop.permute.xlu0 %1530
      %1532 = vrot.lane.b32.xlu0 %v1503, 45
      %v1533 = vpop.permute.xlu0 %1532
      %1534 = vrot.lane.b32.xlu0 %v1504, 45
      %v1535 = vpop.permute.xlu0 %1534
      %1536 = vrot.lane.b32.xlu0 %v1505, 45
      %v1537 = vpop.permute.xlu0 %1536
      %1538 = vrot.lane.b32.xlu0 %v1506, 45
      %v1539 = vpop.permute.xlu0 %1538
      %vm1540 = vcmask 367616
      %v1541 = vsel %vm1540, %v1529, %v1531
      %v1542 = vsel %vm1540, %v1531, %v1533
      %v1543 = vsel %vm1540, %v1535, %v1537
      %v1544 = vsel %vm1540, %v1537, %v1539
      %v1549 = vsel %vm1520, %v1541, 0.0
      %v1550 = vsel %vm1521, %v1542, 0.0
      %v1551 = vsel %vm1520, %v1543, 0.0
      %v1552 = vsel %vm1521, %v1544, 0.0
      %1553 = vst [vmem:[#allocation4 + $0x40] sm:$0xff] %v1549
      %1554 = vst [vmem:[#allocation4 + $0x48] sm:$0xff] %v1550
      %1555 = vst [vmem:[#allocation4 + $0x50] sm:$0xff] %v1551
      %1556 = vst [vmem:[#allocation4 + $0x58] sm:$0xff] %v1552
      %v1557 = vld [vmem:[#allocation3] sm:$0xff]
      %v1558 = vld [vmem:[#allocation3 + $0x8] sm:$0xff]
      %v1559 = vld [vmem:[#allocation3 + $0x10] sm:$0xff]
      %v1560 = vld [vmem:[#allocation3 + $0x20] sm:$0xff]
      %v1561 = vld [vmem:[#allocation3 + $0x28] sm:$0xff]
      %v1562 = vld [vmem:[#allocation3 + $0x30] sm:$0xff]
      %1569 = vrot.lane.b32.xlu0 %v1557, 3
      %v1570 = vpop.permute.xlu0 %1569
      %1571 = vrot.lane.b32.xlu0 %v1558, 3
      %v1572 = vpop.permute.xlu0 %1571
      %1573 = vrot.lane.b32.xlu0 %v1559, 3
      %v1574 = vpop.permute.xlu0 %1573
      %1575 = vrot.lane.b32.xlu0 %v1560, 3
      %v1576 = vpop.permute.xlu0 %1575
      %1577 = vrot.lane.b32.xlu0 %v1561, 3
      %v1578 = vpop.permute.xlu0 %1577
      %1579 = vrot.lane.b32.xlu0 %v1562, 3
      %v1580 = vpop.permute.xlu0 %1579
      %vm1581 = vcmask 23552
      %v1582 = vsel %vm1581, %v1570, %v1572
      %v1583 = vsel %vm1581, %v1572, %v1574
      %v1584 = vsel %vm1581, %v1576, %v1578
      %v1585 = vsel %vm1581, %v1578, %v1580
      %v1590 = vsel %vm1427, %v1582, 0.0
      %v1591 = vsel %vm1428, %v1583, 0.0
      %v1592 = vsel %vm1427, %v1584, 0.0
      %v1593 = vsel %vm1428, %v1585, 0.0
      %1594 = vst [vmem:[#allocation4 + $0x60] sm:$0xff] %v1590
      %1595 = vst [vmem:[#allocation4 + $0x68] sm:$0xff] %v1591
      %1596 = vst [vmem:[#allocation4 + $0x70] sm:$0xff] %v1592
      %1597 = vst [vmem:[#allocation4 + $0x78] sm:$0xff] %v1593
      %v1598 = vld [vmem:[#allocation3 + $0x8] sm:$0xff]
      %v1599 = vld [vmem:[#allocation3 + $0x10] sm:$0xff]
      %v1600 = vld [vmem:[#allocation3 + $0x28] sm:$0xff]
      %v1601 = vld [vmem:[#allocation3 + $0x30] sm:$0xff]
      %1602 = vst [vmem:[#allocation4 + $0x80] sm:$0xff] %v1598
      %1603 = vst [vmem:[#allocation4 + $0x88] sm:$0xff] %v1599
      %1604 = vst [vmem:[#allocation4 + $0x90] sm:$0xff] %v1600
      %1605 = vst [vmem:[#allocation4 + $0x98] sm:$0xff] %v1601
      %v1606 = vld [vmem:[#allocation3 + $0x8] sm:$0xff]
      %v1607 = vld [vmem:[#allocation3 + $0x10] sm:$0xff]
      %v1608 = vld [vmem:[#allocation3 + $0x18] sm:$0xff]
      %v1609 = vld [vmem:[#allocation3 + $0x28] sm:$0xff]
      %v1610 = vld [vmem:[#allocation3 + $0x30] sm:$0xff]
      %v1611 = vld [vmem:[#allocation3 + $0x38] sm:$0xff]
      %1618 = vrot.lane.b32.xlu0 %v1606, 125
      %v1619 = vpop.permute.xlu0 %1618
      %1620 = vrot.lane.b32.xlu0 %v1607, 125
      %v1621 = vpop.permute.xlu0 %1620
      %1622 = vrot.lane.b32.xlu0 %v1608, 125
      %v1623 = vpop.permute.xlu0 %1622
      %1624 = vrot.lane.b32.xlu0 %v1609, 125
      %v1625 = vpop.permute.xlu0 %1624
      %1626 = vrot.lane.b32.xlu0 %v1610, 125
      %v1627 = vpop.permute.xlu0 %1626
      %1628 = vrot.lane.b32.xlu0 %v1611, 125
      %v1629 = vpop.permute.xlu0 %1628
      %vm1630 = vcmask 1022976
      %v1631 = vsel %vm1630, %v1619, %v1621
      %v1632 = vsel %vm1630, %v1621, %v1623
      %v1633 = vsel %vm1630, %v1625, %v1627
      %v1634 = vsel %vm1630, %v1627, %v1629
      %v1639 = vsel %vm1520, %v1631, 0.0
      %v1640 = vsel %vm1521, %v1632, 0.0
      %v1641 = vsel %vm1520, %v1633, 0.0
      %v1642 = vsel %vm1521, %v1634, 0.0
      %1643 = vst [vmem:[#allocation4 + $0xa0] sm:$0xff] %v1639
      %1644 = vst [vmem:[#allocation4 + $0xa8] sm:$0xff] %v1640
      %1645 = vst [vmem:[#allocation4 + $0xb0] sm:$0xff] %v1641
      %1646 = vst [vmem:[#allocation4 + $0xb8] sm:$0xff] %v1642
      %v1647 = vld [vmem:[#allocation3 + $0x8] sm:$0xff]
      %v1648 = vld [vmem:[#allocation3 + $0x10] sm:$0xff]
      %v1649 = vld [vmem:[#allocation3 + $0x18] sm:$0xff]
      %v1650 = vld [vmem:[#allocation3 + $0x28] sm:$0xff]
      %v1651 = vld [vmem:[#allocation3 + $0x30] sm:$0xff]
      %v1652 = vld [vmem:[#allocation3 + $0x38] sm:$0xff]
      %1659 = vrot.lane.b32.xlu0 %v1647, 83
      %v1660 = vpop.permute.xlu0 %1659
      %1661 = vrot.lane.b32.xlu0 %v1648, 83
      %v1662 = vpop.permute.xlu0 %1661
      %1663 = vrot.lane.b32.xlu0 %v1649, 83
      %v1664 = vpop.permute.xlu0 %1663
      %1665 = vrot.lane.b32.xlu0 %v1650, 83
      %v1666 = vpop.permute.xlu0 %1665
      %1667 = vrot.lane.b32.xlu0 %v1651, 83
      %v1668 = vpop.permute.xlu0 %1667
      %1669 = vrot.lane.b32.xlu0 %v1652, 83
      %v1670 = vpop.permute.xlu0 %1669
      %vm1671 = vcmask 678912
      %v1672 = vsel %vm1671, %v1660, %v1662
      %v1673 = vsel %vm1671, %v1662, %v1664
      %v1674 = vsel %vm1671, %v1666, %v1668
      %v1675 = vsel %vm1671, %v1668, %v1670
      %v1680 = vsel %vm1427, %v1672, 0.0
      %v1681 = vsel %vm1428, %v1673, 0.0
      %v1682 = vsel %vm1427, %v1674, 0.0
      %v1683 = vsel %vm1428, %v1675, 0.0
      %1684 = vst [vmem:[#allocation4 + $0xc0] sm:$0xff] %v1680
      %1685 = vst [vmem:[#allocation4 + $0xc8] sm:$0xff] %v1681
      %1686 = vst [vmem:[#allocation4 + $0xd0] sm:$0xff] %v1682
      %1687 = vst [vmem:[#allocation4 + $0xd8] sm:$0xff] %v1683
      %v1688 = vld [vmem:[#allocation3 + $0x8] sm:$0xff]
      %v1689 = vld [vmem:[#allocation3 + $0x10] sm:$0xff]
      %v1690 = vld [vmem:[#allocation3 + $0x18] sm:$0xff]
      %v1691 = vld [vmem:[#allocation3 + $0x28] sm:$0xff]
      %v1692 = vld [vmem:[#allocation3 + $0x30] sm:$0xff]
      %v1693 = vld [vmem:[#allocation3 + $0x38] sm:$0xff]
      %1700 = vrot.lane.b32.xlu0 %v1688, 80
      %v1701 = vpop.permute.xlu0 %1700
      %1702 = vrot.lane.b32.xlu0 %v1689, 80
      %v1703 = vpop.permute.xlu0 %1702
      %1704 = vrot.lane.b32.xlu0 %v1690, 80
      %v1705 = vpop.permute.xlu0 %1704
      %1706 = vrot.lane.b32.xlu0 %v1691, 80
      %v1707 = vpop.permute.xlu0 %1706
      %1708 = vrot.lane.b32.xlu0 %v1692, 80
      %v1709 = vpop.permute.xlu0 %1708
      %1710 = vrot.lane.b32.xlu0 %v1693, 80
      %v1711 = vpop.permute.xlu0 %1710
      %vm1712 = vcmask 654336
      %v1713 = vsel %vm1712, %v1701, %v1703
      %v1714 = vsel %vm1712, %v1703, %v1705
      %v1715 = vsel %vm1712, %v1707, %v1709
      %v1716 = vsel %vm1712, %v1709, %v1711
      %1721 = vst [vmem:[#allocation4 + $0xe0] sm:$0xff] %v1713
      %1722 = vst [vmem:[#allocation4 + $0xe8] sm:$0xff] %v1714
      %1723 = vst [vmem:[#allocation4 + $0xf0] sm:$0xff] %v1715
      %1724 = vst [vmem:[#allocation4 + $0xf8] sm:$0xff] %v1716
      %v1725 = vld [vmem:[#allocation3 + $0x8] sm:$0xff]
      %v1726 = vld [vmem:[#allocation3 + $0x10] sm:$0xff]
      %v1727 = vld [vmem:[#allocation3 + $0x18] sm:$0xff]
      %v1728 = vld [vmem:[#allocation3 + $0x28] sm:$0xff]
      %v1729 = vld [vmem:[#allocation3 + $0x30] sm:$0xff]
      %v1730 = vld [vmem:[#allocation3 + $0x38] sm:$0xff]
      %1737 = vrot.lane.b32.xlu0 %v1725, 77
      %v1738 = vpop.permute.xlu0 %1737
      %1739 = vrot.lane.b32.xlu0 %v1726, 77
      %v1740 = vpop.permute.xlu0 %1739
      %1741 = vrot.lane.b32.xlu0 %v1727, 77
      %v1742 = vpop.permute.xlu0 %1741
      %1743 = vrot.lane.b32.xlu0 %v1728, 77
      %v1744 = vpop.permute.xlu0 %1743
      %1745 = vrot.lane.b32.xlu0 %v1729, 77
      %v1746 = vpop.permute.xlu0 %1745
      %1747 = vrot.lane.b32.xlu0 %v1730, 77
      %v1748 = vpop.permute.xlu0 %1747
      %vm1749 = vcmask 629760
      %v1750 = vsel %vm1749, %v1738, %v1740
      %v1751 = vsel %vm1749, %v1740, %v1742
      %v1752 = vsel %vm1749, %v1744, %v1746
      %v1753 = vsel %vm1749, %v1746, %v1748
      %v1758 = vsel %vm1520, %v1750, 0.0
      %v1759 = vsel %vm1521, %v1751, 0.0
      %v1760 = vsel %vm1520, %v1752, 0.0
      %v1761 = vsel %vm1521, %v1753, 0.0
      %1762 = vst [vmem:[#allocation4 + $0x100] sm:$0xff] %v1758
      %1763 = vst [vmem:[#allocation4 + $0x108] sm:$0xff] %v1759
      %1764 = vst [vmem:[#allocation4 + $0x110] sm:$0xff] %v1760
      %1765 = vst [vmem:[#allocation4 + $0x118] sm:$0xff] %v1761
      %v1766 = vld [vmem:[%s10] sm:$0xff]
      %v1767 = vld [vmem:[#allocation4] sm:$0xff]
      %v1768 = vld [vmem:[#allocation4 + $0x8] sm:$0xff]
      %v1769 = vld [vmem:[#allocation4 + $0x10] sm:$0xff]
      %v1770 = vld [vmem:[#allocation4 + $0x18] sm:$0xff]
      %v1771 = vld [vmem:[#allocation4 + $0x20] sm:$0xff]
      %v1772 = vld [vmem:[#allocation4 + $0x28] sm:$0xff]
      %v1773 = vld [vmem:[#allocation4 + $0x30] sm:$0xff]
      %v1774 = vld [vmem:[#allocation4 + $0x38] sm:$0xff]
      %v1775 = vld [vmem:[#allocation4 + $0x40] sm:$0xff]
      %v1776 = vld [vmem:[#allocation4 + $0x48] sm:$0xff]
      %v1777 = vld [vmem:[#allocation4 + $0x50] sm:$0xff]
      %v1778 = vld [vmem:[#allocation4 + $0x58] sm:$0xff]
      %v1779 = vld [vmem:[#allocation4 + $0x60] sm:$0xff]
      %v1780 = vld [vmem:[#allocation4 + $0x68] sm:$0xff]
      %v1781 = vld [vmem:[#allocation4 + $0x70] sm:$0xff]
      %v1782 = vld [vmem:[#allocation4 + $0x78] sm:$0xff]
      %v1783 = vld [vmem:[#allocation4 + $0x80] sm:$0xff]
      %v1784 = vld [vmem:[#allocation4 + $0x88] sm:$0xff]
      %v1785 = vld [vmem:[#allocation4 + $0x90] sm:$0xff]
      %v1786 = vld [vmem:[#allocation4 + $0x98] sm:$0xff]
      %v1787 = vld [vmem:[#allocation4 + $0xa0] sm:$0xff]
      %v1788 = vld [vmem:[#allocation4 + $0xa8] sm:$0xff]
      %v1789 = vld [vmem:[#allocation4 + $0xb0] sm:$0xff]
      %v1790 = vld [vmem:[#allocation4 + $0xb8] sm:$0xff]
      %v1791 = vld [vmem:[#allocation4 + $0xc0] sm:$0xff]
      %v1792 = vld [vmem:[#allocation4 + $0xc8] sm:$0xff]
      %v1793 = vld [vmem:[#allocation4 + $0xd0] sm:$0xff]
      %v1794 = vld [vmem:[#allocation4 + $0xd8] sm:$0xff]
      %v1795 = vld [vmem:[#allocation4 + $0xe0] sm:$0xff]
      %v1796 = vld [vmem:[#allocation4 + $0xe8] sm:$0xff]
      %v1797 = vld [vmem:[#allocation4 + $0xf0] sm:$0xff]
      %v1798 = vld [vmem:[#allocation4 + $0xf8] sm:$0xff]
      %v1799 = vld [vmem:[#allocation4 + $0x100] sm:$0xff]
      %v1800 = vld [vmem:[#allocation4 + $0x108] sm:$0xff]
      %v1801 = vld [vmem:[#allocation4 + $0x110] sm:$0xff]
      %v1802 = vld [vmem:[#allocation4 + $0x118] sm:$0xff]
      %v1804 = vcombine.high %v1766, %v1766
      %v1805 = vsel %vm551, %v1804, 0
      %1807 = vmatprep.subr.mxu0 %v1798
      %1808 = vmatpush1.msra.mxu0 %v1797
      %1809 = vmatprep.subr.mxu0 %v1796
      %1810 = vmatpush1.msra.mxu0 %v1795
      %1811 = vmatprep.subr.mxu0 %v1794
      %1812 = vmatpush1.msra.mxu0 %v1793
      %1813 = vmatprep.subr.mxu0 %v1792
      %1814 = vmatpush1.msra.mxu0 %v1791
      %1815 = vmatprep.subr.mxu0 %v1790
      %1816 = vmatpush1.msra.mxu0 %v1789
      %1817 = vmatprep.subr.mxu0 %v1788
      %1818 = vmatpush1.msra.mxu0 %v1787
      %1819 = vmatprep.subr.mxu0 %v1786
      %1820 = vmatpush1.msra.mxu0 %v1785
      %1821 = vmatprep.subr.mxu0 %v1784
      %1822 = vmatpush1.msra.mxu0 %v1783
      %1823 = vmatprep.subr.mxu0 %v1782
      %1824 = vmatpush1.msra.mxu0 %v1781
      %1825 = vmatprep.subr.mxu0 %v1780
      %1826 = vmatpush1.msra.mxu0 %v1779
      %1827 = vmatprep.subr.mxu0 %v1778
      %1828 = vmatpush1.msra.mxu0 %v1777
      %1829 = vmatprep.subr.mxu0 %v1776
      %1830 = vmatpush1.msra.mxu0 %v1775
      %1831 = vmatprep.subr.mxu0 %v1774
      %1832 = vmatpush1.msra.mxu0 %v1773
      %1833 = vmatprep.subr.mxu0 %v1772
      %1834 = vmatpush1.msra.mxu0 %v1771
      %1835 = vmatprep.subr.mxu0 %v1770
      %1836 = vmatpush1.msra.mxu0 %v1769
      %1837 = vmatprep.subr.mxu0 %v1768
      %1838 = vmatpush1.msra.mxu0 %v1767
      %1839 = vmatprep.subr.mxu0 0.0
      %1840 = vmatpush2.msra.mxu0 0.0
      %1841 = vmatprep.subr.mxu0 0.0
      %1842 = vmatpush2.msra.mxu0 0.0
      %1843 = vmatprep.subr.mxu0 0.0
      %1844 = vmatpush2.msra.mxu0 0.0
      %1845 = vmatprep.subr.mxu0 0.0
      %1846 = vmatpush2.msra.mxu0 0.0
      %1847 = vmatprep.subr.mxu0 0.0
      %1848 = vmatpush2.msra.mxu0 0.0
      %1849 = vmatprep.subr.mxu0 0.0
      %1850 = vmatpush2.msra.mxu0 0.0
      %1851 = vmatprep.subr.mxu0 0.0
      %1852 = vmatpush2.msra.mxu0 0.0
      %1853 = vmatprep.subr.mxu0 0.0
      %1854 = vmatpush2.msra.mxu0 0.0
      %1855 = vmatprep.subr.mxu0 0.0
      %1856 = vmatpush2.msra.mxu0 0.0
      %1857 = vmatprep.subr.mxu0 0.0
      %1858 = vmatpush2.msra.mxu0 0.0
      %1859 = vmatprep.subr.mxu0 0.0
      %1860 = vmatpush2.msra.mxu0 0.0
      %1861 = vmatprep.subr.mxu0 0.0
      %1862 = vmatpush2.msra.mxu0 0.0
      %1863 = vmatprep.subr.mxu0 0.0
      %1864 = vmatpush2.msra.mxu0 0.0
      %1865 = vmatprep.subr.mxu0 0.0
      %1866 = vmatpush2.msra.mxu0 0.0
      %1867 = vmatprep.subr.mxu0 %v1802
      %1868 = vmatpush2.msra.mxu0 %v1801
      %1869 = vmatprep.subr.mxu0 %v1800
      %1870 = vmatpush2.msra.mxu0 %v1799
      %1871 = vmatprep.mubr.f32.mxu0 %v1805
      %1872 = vmatmul.mubr.f32.gmra.mxu0 %v1766
      %v1873 = vpop.f32.mrf.mxu0
      %v1874 = vadd.f32 0.0, %v1873
      %v1875 = vpop.f32.mrf.mxu0
      %v1876 = vadd.f32 0.0, %v1875
      %1877 = vdwg.mxu0
      %1878 = vst [vmem:[#allocation2 + $0x20] sm:$0xf] %v1874
      %1879 = vst [vmem:[#allocation2 + $0x28] sm:$0xf] %v1876
      %v1880 = vld [vmem:[#allocation2] sm:$0xff]
      %v1881 = vld [vmem:[#allocation2 + $0x8] sm:$0xff]
      %v1882 = vld [vmem:[#allocation2 + $0x10] sm:$0xff]
      %v1883 = vld [vmem:[#allocation2 + $0x18] sm:$0xff]
      %v1884 = vld [vmem:[#allocation2 + $0x20] sm:$0xf]
      %v1885 = vld [vmem:[#allocation2 + $0x28] sm:$0xf]
      %v1886 = vld [vmem:[%s11] sm:$0xff]
      %v1887 = vld [vmem:[%s11 + $0x8] sm:$0xff]
      %v1888 = vld [vmem:[%s11 + $0x10] sm:$0xf]
      %1890 = vset.pattern.permute.xlu0 0
      %1891 = vperm.xlu0 %1890, %v1886
      %v1892 = vpop.permute.xlu0 %1891
      %1895 = vset.pattern.permute.xlu0 0
      %1896 = vperm.xlu0 %1895, %v1887
      %v1897 = vpop.permute.xlu0 %1896
      %1900 = vset.pattern.permute.xlu0 0
      %1901 = vperm.xlu0 %1900, %v1888
      %v1902 = vpop.permute.xlu0 %1901
      %v1904 = vmul.f32 %v1880, %v1892
      %v1905 = vmul.f32 %v1881, %v1892
      %v1906 = vmul.f32 %v1882, %v1897
      %v1907 = vmul.f32 %v1883, %v1897
      %v1908 = vmul.f32 %v1884, %v1902
      %v1909 = vmul.f32 %v1885, %v1902
      %v1910 = vld [vmem:[%s12] sm:$0xff]
      %v1911 = vld [vmem:[%s12 + $0x8] sm:$0xff]
      %v1912 = vld [vmem:[%s12 + $0x10] sm:$0xf]
      %1914 = vset.pattern.permute.xlu0 0
      %1915 = vperm.xlu0 %1914, %v1910
      %v1916 = vpop.permute.xlu0 %1915
      %1919 = vset.pattern.permute.xlu0 0
      %1920 = vperm.xlu0 %1919, %v1911
      %v1921 = vpop.permute.xlu0 %1920
      %1924 = vset.pattern.permute.xlu0 0
      %1925 = vperm.xlu0 %1924, %v1912
      %v1926 = vpop.permute.xlu0 %1925
      %v1928 = vadd.f32 %v1904, %v1916
      %v1929 = vadd.f32 %v1905, %v1916
      %v1930 = vadd.f32 %v1906, %v1921
      %v1931 = vadd.f32 %v1907, %v1921
      %v1932 = vadd.f32 %v1908, %v1926
      %v1933 = vadd.f32 %v1909, %v1926
      %v1934 = vmax.f32 %v1928, 0.0
      %v1935 = vmax.f32 %v1929, 0.0
      %v1936 = vmax.f32 %v1930, 0.0
      %v1937 = vmax.f32 %v1931, 0.0
      %v1938 = vmax.f32 %v1932, 0.0
      %v1939 = vmax.f32 %v1933, 0.0
      %v1940 = vld [vmem:[%s13] sm:$0xff]
      %v1941 = vld [vmem:[%s13 + $0x8] sm:$0xff]
      %vm1942 = vcmask 162816
      %v1944 = vsel %vm1942, %v1940, 0
      %v1947 = vsel %vm1942, %v1941, 0
      %v1950 = vsel %vm909, %v1938, 0
      %v1953 = vsel %vm909, %v1939, 0
      %1955 = vmatprep.subr.mxu0 0.0
      %1956 = vmatpush1.msra.mxu0 0.0
      %1957 = vmatprep.subr.mxu0 0.0
      %1958 = vmatpush1.msra.mxu0 0.0
      %1959 = vmatprep.subr.mxu0 0.0
      %1960 = vmatpush1.msra.mxu0 0.0
      %1961 = vmatprep.subr.mxu0 0.0
      %1962 = vmatpush1.msra.mxu0 0.0
      %1963 = vmatprep.subr.mxu0 0.0
      %1964 = vmatpush1.msra.mxu0 0.0
      %1965 = vmatprep.subr.mxu0 0.0
      %1966 = vmatpush1.msra.mxu0 0.0
      %1967 = vmatprep.subr.mxu0 0.0
      %1968 = vmatpush1.msra.mxu0 0.0
      %1969 = vmatprep.subr.mxu0 0.0
      %1970 = vmatpush1.msra.mxu0 0.0
      %1971 = vmatprep.subr.mxu0 0.0
      %1972 = vmatpush1.msra.mxu0 0.0
      %1973 = vmatprep.subr.mxu0 0.0
      %1974 = vmatpush1.msra.mxu0 0.0
      %1975 = vmatprep.subr.mxu0 0.0
      %1976 = vmatpush1.msra.mxu0 0.0
      %1977 = vmatprep.subr.mxu0 0.0
      %1978 = vmatpush1.msra.mxu0 0.0
      %1979 = vmatprep.subr.mxu0 0.0
      %1980 = vmatpush1.msra.mxu0 0.0
      %1981 = vmatprep.subr.mxu0 %v1953
      %1982 = vmatpush1.msra.mxu0 %v1950
      %1983 = vmatprep.subr.mxu0 %v1937
      %1984 = vmatpush1.msra.mxu0 %v1936
      %1985 = vmatprep.subr.mxu0 %v1935
      %1986 = vmatpush1.msra.mxu0 %v1934
      %1987 = vmatprep.subr.mxu0 0.0
      %1988 = vmatpush2.msra.mxu0 0.0
      %1989 = vmatprep.subr.mxu0 0.0
      %1990 = vmatpush2.msra.mxu0 0.0
      %1991 = vmatprep.subr.mxu0 0.0
      %1992 = vmatpush2.msra.mxu0 0.0
      %1993 = vmatprep.subr.mxu0 0.0
      %1994 = vmatpush2.msra.mxu0 0.0
      %1995 = vmatprep.subr.mxu0 0.0
      %1996 = vmatpush2.msra.mxu0 0.0
      %1997 = vmatprep.subr.mxu0 0.0
      %1998 = vmatpush2.msra.mxu0 0.0
      %1999 = vmatprep.subr.mxu0 0.0
      %2000 = vmatpush2.msra.mxu0 0.0
      %2001 = vmatprep.subr.mxu0 0.0
      %2002 = vmatpush2.msra.mxu0 0.0
      %2003 = vmatprep.subr.mxu0 0.0
      %2004 = vmatpush2.msra.mxu0 0.0
      %2005 = vmatprep.subr.mxu0 0.0
      %2006 = vmatpush2.msra.mxu0 0.0
      %2007 = vmatprep.subr.mxu0 0.0
      %2008 = vmatpush2.msra.mxu0 0.0
      %2009 = vmatprep.subr.mxu0 0.0
      %2010 = vmatpush2.msra.mxu0 0.0
      %2011 = vmatprep.subr.mxu0 0.0
      %2012 = vmatpush2.msra.mxu0 0.0
      %2013 = vmatprep.subr.mxu0 0.0
      %2014 = vmatpush2.msra.mxu0 0.0
      %2015 = vmatprep.subr.mxu0 0.0
      %2016 = vmatpush2.msra.mxu0 0.0
      %2017 = vmatprep.subr.mxu0 0.0
      %2018 = vmatpush2.msra.mxu0 0.0
      %2019 = vmatprep.mubr.f32.mxu0 0.0
      %2020 = vmatmul.mubr.f32.gmra.mxu0 %v1944
      %v2021 = vpop.f32.mrf.mxu0
      %v2022 = vadd.f32 0.0, %v2021
      %v2023 = vpop.f32.mrf.mxu0
      %v2024 = vadd.f32 0.0, %v2023
      %2025 = vmatprep.mubr.f32.mxu0 0.0
      %2026 = vmatmul.mubr.f32.gmra.mxu0 %v1947
      %v2027 = vpop.f32.mrf.mxu0
      %v2028 = vadd.f32 0.0, %v2027
      %v2029 = vpop.f32.mrf.mxu0
      %v2030 = vadd.f32 0.0, %v2029
      %2031 = vdwg.mxu0
      %v2032 = vmax.f32 %v2022, 0.0
      %v2033 = vmax.f32 %v2024, 0.0
      %v2034 = vmax.f32 %v2028, 0.0
      %v2035 = vmax.f32 %v2030, 0.0
      %2036 = vst [vmem:[%s467] sm:$0xff] %v2032
      %2037 = vst [vmem:[%s467 + $0x8] sm:$0xff] %v2033
      %2038 = vst [vmem:[%s467 + $0x10] sm:$0xff] %v2034
      %2039 = vst [vmem:[%s467 + $0x18] sm:$0xff] %v2035
      %p2040 = scmp.lt.s32.totalorder %s25, 1
      %s2041 = scalar_select %p2040, %s25, 1
      %s2042 = smul.addr %s2041, 4
      %s2043 = smul.addr %s2042, 8
      %s2044 = scalar_lea.vmem %s14, %s2043
      // Predicated region
      $region77: #{dense_ddcb_forward.1} parent=75 // pred_check
        %p2045 = pneg %p342
      $region78: #{dense_ddcb_forward.1} parent=75 // pred_check_branch
        %2047 = sbr.rel (%p2045) target = $region80
      $region79: #{dense_ddcb_forward.1} parent=75 // pred_region
        _
      $region80: #{dense_ddcb_forward.1} parent=75 // pred_fallthru
        _
    $region76: #{dense_ddcb_forward.1} parent=5 // pred_fallthru
      _
    %p2048 = scmp.le.s32.totalorder 2, %s20
    // Predicated region
    $region81: #{dense_ddcb_forward.1} parent=5 // pred_check
      %p2049 = pneg %p2048
    $region82: #{dense_ddcb_forward.1} parent=5 // pred_check_branch
      %2051 = sbr.rel (%p2049) target = $region84
    $region83: #{dense_ddcb_forward.1} parent=5 // pred_region
      %s2052 = ssub.s32 %s20, 2
      // Predicated region
      $region85: #{dense_ddcb_forward.1} parent=83 // pred_check
        %p2053 = pneg %p348
      $region86: #{dense_ddcb_forward.1} parent=83 // pred_check_branch
        %2055 = sbr.rel (%p2053) target = $region88
      $region87: #{dense_ddcb_forward.1} parent=83 // pred_region
        %p2056 = scmp.lt.s32.totalorder %s26, 1
        %s2057 = scalar_select %p2056, %s26, 1
        %s2058 = smul.addr %s2057, 4
        %s2059 = smul.addr %s2058, 8
        %s2060 = scalar_lea.vmem %s14, %s2059
      $region88: #{dense_ddcb_forward.1} parent=83 // pred_fallthru
        _
    $region84: #{dense_ddcb_forward.1} parent=5 // pred_fallthru
      _
  $region6: #{dense_ddcb_forward.1} parent=0 // loop_footer
    %s24 = sadd.s32 1, %s20
  $region7: #{dense_ddcb_forward.1} parent=0 // loop_footer_branch
    %19 = sbr.rel target = $region3
  $region8: #{dense_ddcb_forward.1} parent=0 // loop_exit
    _

</llo_original>
